<compile_context>
chip_gen: v7x
topology: tpu7x:2x2x1
jax: 0.10.0
libtpu: 0.0.40
codegen_flags: <defaults>
</compile_context>

<pallas_src>
import jax
import jax.numpy as jnp
from jax.experimental import pallas as pl
from jax.experimental.pallas import tpu as pltpu

# ---------------- problem sizes (small, consistent with the module) ----------------
B = 2                       # batch
N = 8                       # sequence length
C = 32                      # embed_dim
NUM_HEADS = 8
HEAD_DIM = C // NUM_HEADS   # 4
HIDDEN = int(C * 4.0)       # mlp_ratio = 4.0 -> 128
SCALE = HEAD_DIM ** (-0.5)
LN_EPS = 1e-5
_INV_SQRT2 = 0.7071067811865476


def _layer_norm(x, gamma, beta):
    mu = jnp.mean(x, axis=-1, keepdims=True)
    xc = x - mu
    var = jnp.mean(xc * xc, axis=-1, keepdims=True)
    return xc * jax.lax.rsqrt(var + LN_EPS) * gamma + beta


def _erf(x):
    # Abramowitz & Stegun 7.1.26, |error| < 1.5e-7 (lax.erf has no Mosaic lowering).
    a1, a2, a3, a4, a5 = 0.254829592, -0.284496736, 1.421413741, -1.453152027, 1.061405429
    p = 0.3275911
    sign = jnp.where(x >= 0.0, 1.0, -1.0)
    ax = jnp.abs(x)
    t = 1.0 / (1.0 + p * ax)
    poly = ((((a5 * t + a4) * t + a3) * t + a2) * t + a1) * t
    return sign * (1.0 - poly * jnp.exp(-ax * ax))


def _gelu_exact(x):
    return 0.5 * x * (1.0 + _erf(x * _INV_SQRT2))


def _block_kernel(x_ref, g1_ref, b1_ref, wqkv_ref, wproj_ref, bproj_ref,
                  g2_ref, b2_ref, wfc1_ref, bfc1_ref, wfc2_ref, bfc2_ref,
                  maskk_ref, maskv_ref, segsum_ref, o_ref):
    """Single invocation: full transformer encoder block on (B*N, C) tokens."""
    x = x_ref[...]                                                   # (B*N, C)

    # ---------------- LayerNorm 1 + multi-head self-attention ----------------
    h = _layer_norm(x, g1_ref[...], b1_ref[...])
    # Fused QKV projection; softmax scale already folded into the q columns (host side).
    qkv = jnp.dot(h, wqkv_ref[...], preferred_element_type=jnp.float32)   # (B*N, 3C)

    mask_k = maskk_ref[...]        # (C, H*N)  1 where column's head == segment's head
    mask_v = maskv_ref[...]        # (H*N, C)
    seg_sum = segsum_ref[...]      # (H*N, H*N) block-diag of ones (per-head segments)

    ctx_per_batch = []
    for b in range(B):             # static unroll; attention does not mix batches
        rows = qkv[b * N:(b + 1) * N]                                # (N, 3C)
        q = rows[:, 0 * C:1 * C]                                     # (N, C), pre-scaled
        k = rows[:, 1 * C:2 * C]                                     # (N, C)
        v = rows[:, 2 * C:3 * C]                                     # (N, C)

        # Scores for ALL heads in one 2-D MXU dot:
        #   s[n, h*N + m] = sum_d q[n, h*Hd+d] * k[m, h*Hd+d]
        k_rep = jnp.concatenate([k.T] * NUM_HEADS, axis=1)           # (C, H*N)
        s = jnp.dot(q, k_rep * mask_k,
                    preferred_element_type=jnp.float32)              # (N, H*N)

        # Per-head softmax; a shared per-row max is a valid (exact) shift.
        e = jnp.exp(s - jnp.max(s, axis=-1, keepdims=True))
        denom = jnp.dot(e, seg_sum, preferred_element_type=jnp.float32)   # segment sums
        p = e * pl.reciprocal(denom, approx=True)

        # Context for all heads, landing directly in the merged (N, C) layout:
        #   ctx[n, c] = sum_m p[n, head(c)*N + m] * v[m, c]
        v_rep = jnp.concatenate([v] * NUM_HEADS, axis=0)             # (H*N, C)
        ctx_per_batch.append(
            jnp.dot(p, v_rep * mask_v, preferred_element_type=jnp.float32))  # (N, C)

    ctx = jnp.concatenate(ctx_per_batch, axis=0)                     # (B*N, C)
    attn_out = jnp.dot(ctx, wproj_ref[...],
                       preferred_element_type=jnp.float32) + bproj_ref[...]
    x1 = x + attn_out                                                # residual 1

    # ---------------- LayerNorm 2 + MLP ----------------
    h2 = _layer_norm(x1, g2_ref[...], b2_ref[...])
    z = jnp.dot(h2, wfc1_ref[...], preferred_element_type=jnp.float32) + bfc1_ref[...]
    z = _gelu_exact(z)
    mlp_out = jnp.dot(z, wfc2_ref[...], preferred_element_type=jnp.float32) + bfc2_ref[...]

    o_ref[...] = (x1 + mlp_out).astype(o_ref.dtype)                  # residual 2


@jax.jit
def block_pallas(x, g1, b1, w_qkv, w_proj, b_proj, g2, b2, w_fc1, b_fc1, w_fc2, b_fc2):
    """x: (B, N, C). Weights in torch.nn layouts: Linear weight is (out, in)."""
    f32 = jnp.float32
    x2d = x.reshape(B * N, C)

    # Fold the softmax scale into the q rows of the QKV weight, then transpose for x @ W.
    row_scale = jnp.concatenate(
        [jnp.full((C, 1), SCALE, f32), jnp.ones((2 * C, 1), f32)], axis=0)   # (3C, 1)
    wqkv_t = (w_qkv * row_scale).T          # (C, 3C)
    wproj_t = w_proj.T                      # (C, C)
    wfc1_t = w_fc1.T                        # (C, HIDDEN)
    wfc2_t = w_fc2.T                        # (HIDDEN, C)

    # Host-built block-diagonal selection masks (constant-folded by XLA).
    head_of_col = jnp.arange(C, dtype=jnp.int32) // HEAD_DIM          # (C,)
    head_of_seg = jnp.arange(NUM_HEADS * N, dtype=jnp.int32) // N     # (H*N,)
    mask_k = (head_of_col[:, None] == head_of_seg[None, :]).astype(f32)   # (C, H*N)
    mask_v = mask_k.T                                                      # (H*N, C)
    seg_sum = (head_of_seg[:, None] == head_of_seg[None, :]).astype(f32)   # (H*N, H*N)

    vmem = pl.BlockSpec(memory_space=pltpu.MemorySpace.VMEM)
    out2d = pl.pallas_call(
        _block_kernel,
        out_shape=jax.ShapeDtypeStruct((B * N, C), x.dtype),
        in_specs=[vmem] * 15,
        out_specs=vmem,
    )(x2d,
      g1.reshape(1, C), b1.reshape(1, C),
      wqkv_t, wproj_t, b_proj.reshape(1, C),
      g2.reshape(1, C), b2.reshape(1, C),
      wfc1_t, b_fc1.reshape(1, HIDDEN),
      wfc2_t, b_fc2.reshape(1, C),
      mask_k, mask_v, seg_sum)
    return out2d.reshape(B, N, C)


def block_reference(x, g1, b1, w_qkv, w_proj, b_proj, g2, b2, w_fc1, b_fc1, w_fc2, b_fc2):
    """Pure-JAX reference mirroring the PyTorch Block.forward (exact erf GELU)."""
    def ln(y, g, b):
        mu = y.mean(-1, keepdims=True)
        var = ((y - mu) ** 2).mean(-1, keepdims=True)
        return (y - mu) / jnp.sqrt(var + LN_EPS) * g + b

    h = ln(x, g1, b1)
    qkv = (h @ w_qkv.T).reshape(B, N, 3, NUM_HEADS, HEAD_DIM)
    qkv = jnp.transpose(qkv, (2, 0, 3, 1, 4))                 # (3, B, H, N, Hd)
    q, k, v = qkv[0], qkv[1], qkv[2]
    attn = jax.nn.softmax((q @ jnp.swapaxes(k, -2, -1)) * SCALE, axis=-1)
    o = jnp.transpose(attn @ v, (0, 2, 1, 3)).reshape(B, N, C)
    o = o @ w_proj.T + b_proj
    x = x + o
    h2 = ln(x, g2, b2)
    z = jax.nn.gelu(h2 @ w_fc1.T + b_fc1, approximate=False)
    return x + (z @ w_fc2.T + b_fc2)


if __name__ == "__main__":
    key = jax.random.PRNGKey(0)
    ks = jax.random.split(key, 12)
    f32 = jnp.float32

    x      = jax.random.normal(ks[0], (B, N, C), dtype=f32)
    g1     = 1.0 + 0.1 * jax.random.normal(ks[1], (C,), dtype=f32)
    b1     = 0.1 * jax.random.normal(ks[2], (C,), dtype=f32)
    w_qkv  = 0.05 * jax.random.normal(ks[3], (3 * C, C), dtype=f32)
    w_proj = 0.05 * jax.random.normal(ks[4], (C, C), dtype=f32)
    b_proj = 0.05 * jax.random.normal(ks[5], (C,), dtype=f32)
    g2     = 1.0 + 0.1 * jax.random.normal(ks[6], (C,), dtype=f32)
    b2     = 0.1 * jax.random.normal(ks[7], (C,), dtype=f32)
    w_fc1  = 0.05 * jax.random.normal(ks[8], (HIDDEN, C), dtype=f32)
    b_fc1  = 0.05 * jax.random.normal(ks[9], (HIDDEN,), dtype=f32)
    w_fc2  = 0.05 * jax.random.normal(ks[10], (C, HIDDEN), dtype=f32)
    b_fc2  = 0.05 * jax.random.normal(ks[11], (C,), dtype=f32)

    args = (x, g1, b1, w_qkv, w_proj, b_proj, g2, b2, w_fc1, b_fc1, w_fc2, b_fc2)

    out = jax.block_until_ready(block_pallas(*args))
    ref = block_reference(*args)

    assert out.shape == (B, N, C)
    max_err = float(jnp.max(jnp.abs(out - ref)))
    # Tolerance covers the EUP approx reciprocal and the 1.5e-7 erf polynomial.
    assert jnp.allclose(out, ref, atol=2e-3, rtol=2e-3), (
        f"mismatch vs reference (max abs err {max_err})")
    print("KERNEL_OK")
</pallas_src>

<mosaic_0001>
module attributes {stable_mosaic.version = 11 : i64} {
  func.func @_block_kernel(%arg0: memref<16x32xf32, #tpu.memory_space<vmem>>, %arg1: memref<1x32xf32, #tpu.memory_space<vmem>>, %arg2: memref<1x32xf32, #tpu.memory_space<vmem>>, %arg3: memref<32x96xf32, #tpu.memory_space<vmem>>, %arg4: memref<32x32xf32, #tpu.memory_space<vmem>>, %arg5: memref<1x32xf32, #tpu.memory_space<vmem>>, %arg6: memref<1x32xf32, #tpu.memory_space<vmem>>, %arg7: memref<1x32xf32, #tpu.memory_space<vmem>>, %arg8: memref<32x128xf32, #tpu.memory_space<vmem>>, %arg9: memref<1x128xf32, #tpu.memory_space<vmem>>, %arg10: memref<128x32xf32, #tpu.memory_space<vmem>>, %arg11: memref<1x32xf32, #tpu.memory_space<vmem>>, %arg12: memref<32x64xf32, #tpu.memory_space<vmem>>, %arg13: memref<64x32xf32, #tpu.memory_space<vmem>>, %arg14: memref<64x64xf32, #tpu.memory_space<vmem>>, %arg15: memref<16x32xf32, #tpu.memory_space<vmem>>) attributes {dimension_semantics = [], scalar_prefetch = 0 : i64, scratch_operands = 0 : i64, tpu.core_type = #tpu.core_type<tc>} {
    %c0 = arith.constant 0 : index
    %c0_0 = arith.constant 0 : index
    %0 = vector.load %arg0[%c0, %c0_0] : memref<16x32xf32, #tpu.memory_space<vmem>>, vector<16x32xf32>
    %c0_1 = arith.constant 0 : index
    %c0_2 = arith.constant 0 : index
    %1 = vector.load %arg1[%c0_1, %c0_2] : memref<1x32xf32, #tpu.memory_space<vmem>>, vector<1x32xf32>
    %c0_3 = arith.constant 0 : index
    %c0_4 = arith.constant 0 : index
    %2 = vector.load %arg2[%c0_3, %c0_4] : memref<1x32xf32, #tpu.memory_space<vmem>>, vector<1x32xf32>
    %cst = arith.constant dense<0.000000e+00> : vector<16xf32>
    %3 = vector.multi_reduction <add>, %0, %cst [1] : vector<16x32xf32> to vector<16xf32>
    %4 = vector.shape_cast %3 : vector<16xf32> to vector<16x1xf32>
    %cst_5 = arith.constant 3.200000e+01 : f32
    %5 = vector.broadcast %cst_5 : f32 to vector<16x1xf32>
    %6 = arith.divf %4, %5 : vector<16x1xf32>
    %7 = vector.broadcast %6 : vector<16x1xf32> to vector<16x32xf32>
    %8 = arith.subf %0, %7 : vector<16x32xf32>
    %9 = arith.mulf %8, %8 : vector<16x32xf32>
    %cst_6 = arith.constant dense<0.000000e+00> : vector<16xf32>
    %10 = vector.multi_reduction <add>, %9, %cst_6 [1] : vector<16x32xf32> to vector<16xf32>
    %11 = vector.shape_cast %10 : vector<16xf32> to vector<16x1xf32>
    %cst_7 = arith.constant 3.200000e+01 : f32
    %12 = vector.broadcast %cst_7 : f32 to vector<16x1xf32>
    %13 = arith.divf %11, %12 : vector<16x1xf32>
    %cst_8 = arith.constant 9.99999974E-6 : f32
    %14 = vector.broadcast %cst_8 : f32 to vector<16x1xf32>
    %15 = arith.addf %13, %14 : vector<16x1xf32>
    %16 = math.rsqrt %15 : vector<16x1xf32>
    %17 = vector.broadcast %16 : vector<16x1xf32> to vector<16x32xf32>
    %18 = arith.mulf %8, %17 : vector<16x32xf32>
    %19 = vector.broadcast %1 : vector<1x32xf32> to vector<16x32xf32>
    %20 = arith.mulf %18, %19 : vector<16x32xf32>
    %21 = vector.broadcast %2 : vector<1x32xf32> to vector<16x32xf32>
    %22 = arith.addf %20, %21 : vector<16x32xf32>
    %c0_9 = arith.constant 0 : index
    %c0_10 = arith.constant 0 : index
    %23 = vector.load %arg3[%c0_9, %c0_10] : memref<32x96xf32, #tpu.memory_space<vmem>>, vector<32x96xf32>
    %cst_11 = arith.constant dense<0.000000e+00> : vector<16x96xf32>
    %24 = tpu.matmul %22, %23, %cst_11 {dimension_numbers = #tpu.dot_dimension_numbers<[1], [0], [0], [1], [0, 0, 1, 1], [], []>} : vector<16x32xf32>, vector<32x96xf32>, vector<16x96xf32> -> vector<16x96xf32>
    %c0_12 = arith.constant 0 : index
    %c0_13 = arith.constant 0 : index
    %25 = vector.load %arg12[%c0_12, %c0_13] : memref<32x64xf32, #tpu.memory_space<vmem>>, vector<32x64xf32>
    %c0_14 = arith.constant 0 : index
    %c0_15 = arith.constant 0 : index
    %26 = vector.load %arg13[%c0_14, %c0_15] : memref<64x32xf32, #tpu.memory_space<vmem>>, vector<64x32xf32>
    %c0_16 = arith.constant 0 : index
    %c0_17 = arith.constant 0 : index
    %27 = vector.load %arg14[%c0_16, %c0_17] : memref<64x64xf32, #tpu.memory_space<vmem>>, vector<64x64xf32>
    %28 = vector.extract_strided_slice %24 {offsets = [0, 0], sizes = [8, 96], strides = [1, 1]} : vector<16x96xf32> to vector<8x96xf32>
    %29 = vector.extract_strided_slice %28 {offsets = [0, 0], sizes = [8, 32], strides = [1, 1]} : vector<8x96xf32> to vector<8x32xf32>
    %30 = vector.extract_strided_slice %28 {offsets = [0, 32], sizes = [8, 32], strides = [1, 1]} : vector<8x96xf32> to vector<8x32xf32>
    %31 = vector.extract_strided_slice %28 {offsets = [0, 64], sizes = [8, 32], strides = [1, 1]} : vector<8x96xf32> to vector<8x32xf32>
    %32 = tpu.transpose %30, [1, 0] : vector<8x32xf32> -> vector<32x8xf32>
    %33 = tpu.concatenate %32, %32, %32, %32, %32, %32, %32, %32 in 1 : vector<32x8xf32>, vector<32x8xf32>, vector<32x8xf32>, vector<32x8xf32>, vector<32x8xf32>, vector<32x8xf32>, vector<32x8xf32>, vector<32x8xf32> -> vector<32x64xf32>
    %34 = arith.mulf %33, %25 : vector<32x64xf32>
    %cst_18 = arith.constant dense<0.000000e+00> : vector<8x64xf32>
    %35 = tpu.matmul %29, %34, %cst_18 {dimension_numbers = #tpu.dot_dimension_numbers<[1], [0], [0], [1], [0, 0, 1, 1], [], []>} : vector<8x32xf32>, vector<32x64xf32>, vector<8x64xf32> -> vector<8x64xf32>
    %cst_19 = arith.constant dense<0xFF800000> : vector<8xf32>
    %36 = vector.multi_reduction <maximumf>, %35, %cst_19 [1] : vector<8x64xf32> to vector<8xf32>
    %37 = vector.shape_cast %36 : vector<8xf32> to vector<8x1xf32>
    %38 = vector.broadcast %37 : vector<8x1xf32> to vector<8x64xf32>
    %39 = arith.subf %35, %38 : vector<8x64xf32>
    %40 = math.exp %39 : vector<8x64xf32>
    %cst_20 = arith.constant dense<0.000000e+00> : vector<8x64xf32>
    %41 = tpu.matmul %40, %27, %cst_20 {dimension_numbers = #tpu.dot_dimension_numbers<[1], [0], [0], [1], [0, 0, 1, 1], [], []>} : vector<8x64xf32>, vector<64x64xf32>, vector<8x64xf32> -> vector<8x64xf32>
    %42 = tpu.reciprocal %41 {approx = true} : vector<8x64xf32> -> vector<8x64xf32>
    %43 = arith.mulf %40, %42 : vector<8x64xf32>
    %44 = tpu.concatenate %31, %31, %31, %31, %31, %31, %31, %31 in 0 : vector<8x32xf32>, vector<8x32xf32>, vector<8x32xf32>, vector<8x32xf32>, vector<8x32xf32>, vector<8x32xf32>, vector<8x32xf32>, vector<8x32xf32> -> vector<64x32xf32>
    %45 = arith.mulf %44, %26 : vector<64x32xf32>
    %cst_21 = arith.constant dense<0.000000e+00> : vector<8x32xf32>
    %46 = tpu.matmul %43, %45, %cst_21 {dimension_numbers = #tpu.dot_dimension_numbers<[1], [0], [0], [1], [0, 0, 1, 1], [], []>} : vector<8x64xf32>, vector<64x32xf32>, vector<8x32xf32> -> vector<8x32xf32>
    %47 = vector.extract_strided_slice %24 {offsets = [8, 0], sizes = [8, 96], strides = [1, 1]} : vector<16x96xf32> to vector<8x96xf32>
    %48 = vector.extract_strided_slice %47 {offsets = [0, 0], sizes = [8, 32], strides = [1, 1]} : vector<8x96xf32> to vector<8x32xf32>
    %49 = vector.extract_strided_slice %47 {offsets = [0, 32], sizes = [8, 32], strides = [1, 1]} : vector<8x96xf32> to vector<8x32xf32>
    %50 = vector.extract_strided_slice %47 {offsets = [0, 64], sizes = [8, 32], strides = [1, 1]} : vector<8x96xf32> to vector<8x32xf32>
    %51 = tpu.transpose %49, [1, 0] : vector<8x32xf32> -> vector<32x8xf32>
    %52 = tpu.concatenate %51, %51, %51, %51, %51, %51, %51, %51 in 1 : vector<32x8xf32>, vector<32x8xf32>, vector<32x8xf32>, vector<32x8xf32>, vector<32x8xf32>, vector<32x8xf32>, vector<32x8xf32>, vector<32x8xf32> -> vector<32x64xf32>
    %53 = arith.mulf %52, %25 : vector<32x64xf32>
    %cst_22 = arith.constant dense<0.000000e+00> : vector<8x64xf32>
    %54 = tpu.matmul %48, %53, %cst_22 {dimension_numbers = #tpu.dot_dimension_numbers<[1], [0], [0], [1], [0, 0, 1, 1], [], []>} : vector<8x32xf32>, vector<32x64xf32>, vector<8x64xf32> -> vector<8x64xf32>
    %cst_23 = arith.constant dense<0xFF800000> : vector<8xf32>
    %55 = vector.multi_reduction <maximumf>, %54, %cst_23 [1] : vector<8x64xf32> to vector<8xf32>
    %56 = vector.shape_cast %55 : vector<8xf32> to vector<8x1xf32>
    %57 = vector.broadcast %56 : vector<8x1xf32> to vector<8x64xf32>
    %58 = arith.subf %54, %57 : vector<8x64xf32>
    %59 = math.exp %58 : vector<8x64xf32>
    %cst_24 = arith.constant dense<0.000000e+00> : vector<8x64xf32>
    %60 = tpu.matmul %59, %27, %cst_24 {dimension_numbers = #tpu.dot_dimension_numbers<[1], [0], [0], [1], [0, 0, 1, 1], [], []>} : vector<8x64xf32>, vector<64x64xf32>, vector<8x64xf32> -> vector<8x64xf32>
    %61 = tpu.reciprocal %60 {approx = true} : vector<8x64xf32> -> vector<8x64xf32>
    %62 = arith.mulf %59, %61 : vector<8x64xf32>
    %63 = tpu.concatenate %50, %50, %50, %50, %50, %50, %50, %50 in 0 : vector<8x32xf32>, vector<8x32xf32>, vector<8x32xf32>, vector<8x32xf32>, vector<8x32xf32>, vector<8x32xf32>, vector<8x32xf32>, vector<8x32xf32> -> vector<64x32xf32>
    %64 = arith.mulf %63, %26 : vector<64x32xf32>
    %cst_25 = arith.constant dense<0.000000e+00> : vector<8x32xf32>
    %65 = tpu.matmul %62, %64, %cst_25 {dimension_numbers = #tpu.dot_dimension_numbers<[1], [0], [0], [1], [0, 0, 1, 1], [], []>} : vector<8x64xf32>, vector<64x32xf32>, vector<8x32xf32> -> vector<8x32xf32>
    %66 = tpu.concatenate %46, %65 in 0 : vector<8x32xf32>, vector<8x32xf32> -> vector<16x32xf32>
    %c0_26 = arith.constant 0 : index
    %c0_27 = arith.constant 0 : index
    %67 = vector.load %arg4[%c0_26, %c0_27] : memref<32x32xf32, #tpu.memory_space<vmem>>, vector<32x32xf32>
    %cst_28 = arith.constant dense<0.000000e+00> : vector<16x32xf32>
    %68 = tpu.matmul %66, %67, %cst_28 {dimension_numbers = #tpu.dot_dimension_numbers<[1], [0], [0], [1], [0, 0, 1, 1], [], []>} : vector<16x32xf32>, vector<32x32xf32>, vector<16x32xf32> -> vector<16x32xf32>
    %c0_29 = arith.constant 0 : index
    %c0_30 = arith.constant 0 : index
    %69 = vector.load %arg5[%c0_29, %c0_30] : memref<1x32xf32, #tpu.memory_space<vmem>>, vector<1x32xf32>
    %70 = vector.broadcast %69 : vector<1x32xf32> to vector<16x32xf32>
    %71 = arith.addf %68, %70 : vector<16x32xf32>
    %72 = arith.addf %0, %71 : vector<16x32xf32>
    %c0_31 = arith.constant 0 : index
    %c0_32 = arith.constant 0 : index
    %73 = vector.load %arg6[%c0_31, %c0_32] : memref<1x32xf32, #tpu.memory_space<vmem>>, vector<1x32xf32>
    %c0_33 = arith.constant 0 : index
    %c0_34 = arith.constant 0 : index
    %74 = vector.load %arg7[%c0_33, %c0_34] : memref<1x32xf32, #tpu.memory_space<vmem>>, vector<1x32xf32>
    %cst_35 = arith.constant dense<0.000000e+00> : vector<16xf32>
    %75 = vector.multi_reduction <add>, %72, %cst_35 [1] : vector<16x32xf32> to vector<16xf32>
    %76 = vector.shape_cast %75 : vector<16xf32> to vector<16x1xf32>
    %cst_36 = arith.constant 3.200000e+01 : f32
    %77 = vector.broadcast %cst_36 : f32 to vector<16x1xf32>
    %78 = arith.divf %76, %77 : vector<16x1xf32>
    %79 = vector.broadcast %78 : vector<16x1xf32> to vector<16x32xf32>
    %80 = arith.subf %72, %79 : vector<16x32xf32>
    %81 = arith.mulf %80, %80 : vector<16x32xf32>
    %cst_37 = arith.constant dense<0.000000e+00> : vector<16xf32>
    %82 = vector.multi_reduction <add>, %81, %cst_37 [1] : vector<16x32xf32> to vector<16xf32>
    %83 = vector.shape_cast %82 : vector<16xf32> to vector<16x1xf32>
    %cst_38 = arith.constant 3.200000e+01 : f32
    %84 = vector.broadcast %cst_38 : f32 to vector<16x1xf32>
    %85 = arith.divf %83, %84 : vector<16x1xf32>
    %cst_39 = arith.constant 9.99999974E-6 : f32
    %86 = vector.broadcast %cst_39 : f32 to vector<16x1xf32>
    %87 = arith.addf %85, %86 : vector<16x1xf32>
    %88 = math.rsqrt %87 : vector<16x1xf32>
    %89 = vector.broadcast %88 : vector<16x1xf32> to vector<16x32xf32>
    %90 = arith.mulf %80, %89 : vector<16x32xf32>
    %91 = vector.broadcast %73 : vector<1x32xf32> to vector<16x32xf32>
    %92 = arith.mulf %90, %91 : vector<16x32xf32>
    %93 = vector.broadcast %74 : vector<1x32xf32> to vector<16x32xf32>
    %94 = arith.addf %92, %93 : vector<16x32xf32>
    %c0_40 = arith.constant 0 : index
    %c0_41 = arith.constant 0 : index
    %95 = vector.load %arg8[%c0_40, %c0_41] : memref<32x128xf32, #tpu.memory_space<vmem>>, vector<32x128xf32>
    %cst_42 = arith.constant dense<0.000000e+00> : vector<16x128xf32>
    %96 = tpu.matmul %94, %95, %cst_42 {dimension_numbers = #tpu.dot_dimension_numbers<[1], [0], [0], [1], [0, 0, 1, 1], [], []>} : vector<16x32xf32>, vector<32x128xf32>, vector<16x128xf32> -> vector<16x128xf32>
    %c0_43 = arith.constant 0 : index
    %c0_44 = arith.constant 0 : index
    %97 = vector.load %arg9[%c0_43, %c0_44] : memref<1x128xf32, #tpu.memory_space<vmem>>, vector<1x128xf32>
    %98 = vector.broadcast %97 : vector<1x128xf32> to vector<16x128xf32>
    %99 = arith.addf %96, %98 : vector<16x128xf32>
    %cst_45 = arith.constant 5.000000e-01 : f32
    %100 = vector.broadcast %cst_45 : f32 to vector<16x128xf32>
    %101 = arith.mulf %100, %99 : vector<16x128xf32>
    %cst_46 = arith.constant 0.707106769 : f32
    %102 = vector.broadcast %cst_46 : f32 to vector<16x128xf32>
    %103 = arith.mulf %99, %102 : vector<16x128xf32>
    %cst_47 = arith.constant 0.000000e+00 : f32
    %104 = vector.broadcast %cst_47 : f32 to vector<16x128xf32>
    %105 = arith.cmpf oge, %103, %104 : vector<16x128xf32>
    %cst_48 = arith.constant 1.000000e+00 : f32
    %cst_49 = arith.constant -1.000000e+00 : f32
    %106 = vector.broadcast %cst_48 : f32 to vector<16x128xf32>
    %107 = vector.broadcast %cst_49 : f32 to vector<16x128xf32>
    %108 = arith.select %105, %106, %107 : vector<16x128xi1>, vector<16x128xf32>
    %109 = math.absf %103 : vector<16x128xf32>
    %cst_50 = arith.constant 0.327591091 : f32
    %110 = vector.broadcast %cst_50 : f32 to vector<16x128xf32>
    %111 = arith.mulf %110, %109 : vector<16x128xf32>
    %cst_51 = arith.constant 1.000000e+00 : f32
    %112 = vector.broadcast %cst_51 : f32 to vector<16x128xf32>
    %113 = arith.addf %112, %111 : vector<16x128xf32>
    %cst_52 = arith.constant 1.000000e+00 : f32
    %114 = vector.broadcast %cst_52 : f32 to vector<16x128xf32>
    %115 = arith.divf %114, %113 : vector<16x128xf32>
    %cst_53 = arith.constant 1.06140542 : f32
    %116 = vector.broadcast %cst_53 : f32 to vector<16x128xf32>
    %117 = arith.mulf %116, %115 : vector<16x128xf32>
    %cst_54 = arith.constant -1.45315206 : f32
    %118 = vector.broadcast %cst_54 : f32 to vector<16x128xf32>
    %119 = arith.addf %117, %118 : vector<16x128xf32>
    %120 = arith.mulf %119, %115 : vector<16x128xf32>
    %cst_55 = arith.constant 1.42141378 : f32
    %121 = vector.broadcast %cst_55 : f32 to vector<16x128xf32>
    %122 = arith.addf %120, %121 : vector<16x128xf32>
    %123 = arith.mulf %122, %115 : vector<16x128xf32>
    %cst_56 = arith.constant -0.284496725 : f32
    %124 = vector.broadcast %cst_56 : f32 to vector<16x128xf32>
    %125 = arith.addf %123, %124 : vector<16x128xf32>
    %126 = arith.mulf %125, %115 : vector<16x128xf32>
    %cst_57 = arith.constant 0.254829586 : f32
    %127 = vector.broadcast %cst_57 : f32 to vector<16x128xf32>
    %128 = arith.addf %126, %127 : vector<16x128xf32>
    %129 = arith.mulf %128, %115 : vector<16x128xf32>
    %cst_58 = arith.constant 0.000000e+00 : f32
    %130 = vector.broadcast %cst_58 : f32 to vector<16x128xf32>
    %131 = arith.subf %130, %109 : vector<16x128xf32>
    %132 = arith.mulf %131, %109 : vector<16x128xf32>
    %133 = math.exp %132 : vector<16x128xf32>
    %134 = arith.mulf %129, %133 : vector<16x128xf32>
    %cst_59 = arith.constant 1.000000e+00 : f32
    %135 = vector.broadcast %cst_59 : f32 to vector<16x128xf32>
    %136 = arith.subf %135, %134 : vector<16x128xf32>
    %137 = arith.mulf %108, %136 : vector<16x128xf32>
    %cst_60 = arith.constant 1.000000e+00 : f32
    %138 = vector.broadcast %cst_60 : f32 to vector<16x128xf32>
    %139 = arith.addf %138, %137 : vector<16x128xf32>
    %140 = arith.mulf %101, %139 : vector<16x128xf32>
    %c0_61 = arith.constant 0 : index
    %c0_62 = arith.constant 0 : index
    %141 = vector.load %arg10[%c0_61, %c0_62] : memref<128x32xf32, #tpu.memory_space<vmem>>, vector<128x32xf32>
    %cst_63 = arith.constant dense<0.000000e+00> : vector<16x32xf32>
    %142 = tpu.matmul %140, %141, %cst_63 {dimension_numbers = #tpu.dot_dimension_numbers<[1], [0], [0], [1], [0, 0, 1, 1], [], []>} : vector<16x128xf32>, vector<128x32xf32>, vector<16x32xf32> -> vector<16x32xf32>
    %c0_64 = arith.constant 0 : index
    %c0_65 = arith.constant 0 : index
    %143 = vector.load %arg11[%c0_64, %c0_65] : memref<1x32xf32, #tpu.memory_space<vmem>>, vector<1x32xf32>
    %144 = vector.broadcast %143 : vector<1x32xf32> to vector<16x32xf32>
    %145 = arith.addf %142, %144 : vector<16x32xf32>
    %146 = arith.addf %72, %145 : vector<16x32xf32>
    %c0_66 = arith.constant 0 : index
    %c0_67 = arith.constant 0 : index
    %147 = vector.load %arg15[%c0_66, %c0_67] : memref<16x32xf32, #tpu.memory_space<vmem>>, vector<16x32xf32>
    tpu.vector_store %arg15[%c0_66, %c0_67], %146 {strides = array<i32>} : memref<16x32xf32, #tpu.memory_space<vmem>>, vector<16x32xf32>,
    return
  }
}

</mosaic_0001>

<llo_original>
// kernel: block_pallas.1
$region0: #{block_pallas.1}
  #allocation0 [shape = 'u32[]', space=smem, size = 0x4, offset = 0x4, fixed_abs, tag = 'smem constant byte address 0x4 - core index']
  #allocation1 [shape = 'u32[144,128]{1,0:T(1,128)}', space=vmem, size = 0x12000, scoped, tag = 'internal scratch']
  %s0 = inlined_call_operand.vmem [shape: f32[16,32], index: 0, kind: input, shape index: {}]
  %s1 = inlined_call_operand.vmem [shape: f32[1,32], index: 1, kind: input, shape index: {}]
  %s2 = inlined_call_operand.vmem [shape: f32[1,32], index: 2, kind: input, shape index: {}]
  %s3 = inlined_call_operand.vmem [shape: f32[32,96], index: 3, kind: input, shape index: {}]
  %s4 = inlined_call_operand.vmem [shape: f32[32,32], index: 4, kind: input, shape index: {}]
  %s5 = inlined_call_operand.vmem [shape: f32[1,32], index: 5, kind: input, shape index: {}]
  %s6 = inlined_call_operand.vmem [shape: f32[1,32], index: 6, kind: input, shape index: {}]
  %s7 = inlined_call_operand.vmem [shape: f32[1,32], index: 7, kind: input, shape index: {}]
  %s8 = inlined_call_operand.vmem [shape: f32[32,128], index: 8, kind: input, shape index: {}]
  %s9 = inlined_call_operand.vmem [shape: f32[1,128], index: 9, kind: input, shape index: {}]
  %s10 = inlined_call_operand.vmem [shape: f32[128,32], index: 10, kind: input, shape index: {}]
  %s11 = inlined_call_operand.vmem [shape: f32[1,32], index: 11, kind: input, shape index: {}]
  %s12 = inlined_call_operand.vmem [shape: f32[32,64], index: 12, kind: input, shape index: {}]
  %s13 = inlined_call_operand.vmem [shape: f32[64,32], index: 13, kind: input, shape index: {}]
  %s14 = inlined_call_operand.vmem [shape: f32[64,64], index: 14, kind: input, shape index: {}]
  %s15 = inlined_call_operand.hbm [shape: f32[16,32], index: 15, kind: output, shape index: {}]
  %s16 = sld [smem:[#allocation0]]
  $region70: #{block_pallas.1} parent=0
    _
  %s18 = ssub.s32 1, %s16
  %s19 = scalar_select 0, %s18, %s16
  $region1: #{block_pallas.1} parent=0
    #allocation2 [shape = 'u8[8192]{0}', space=vmem, size = 0x2000, scoped, tag = 'output window, operand 0, single buffered']
    #allocation3 [shape = 's32[1]{0}', space=sflag, size = 0x4, scoped, tag = 'scoped memory for block_pallas.1']
    %20 = vsyncpa [#allocation3], 0
    // Predicated region
    $region2: #{block_pallas.1} parent=1 // pred_check
      _
    $region3: #{block_pallas.1} parent=1 // pred_check_branch
      %22 = sbr.rel (0) target = $region5
    $region4: #{block_pallas.1} parent=1 // pred_region
      _
    $region5: #{block_pallas.1} parent=1 // pred_fallthru
      _
    // Predicated region
    $region6: #{block_pallas.1} parent=1 // pred_check
      _
    $region7: #{block_pallas.1} parent=1 // pred_check_branch
      %24 = sbr.rel (0) target = $region9
    $region8: #{block_pallas.1} parent=1 // pred_region
      _
    $region9: #{block_pallas.1} parent=1 // pred_fallthru
      _
    // Predicated region
    $region10: #{block_pallas.1} parent=1 // pred_check
      _
    $region11: #{block_pallas.1} parent=1 // pred_check_branch
      %26 = sbr.rel (0) target = $region13
    $region12: #{block_pallas.1} parent=1 // pred_region
      _
    $region13: #{block_pallas.1} parent=1 // pred_fallthru
      _
    // Predicated region
    $region14: #{block_pallas.1} parent=1 // pred_check
      _
    $region15: #{block_pallas.1} parent=1 // pred_check_branch
      %28 = sbr.rel (0) target = $region17
    $region16: #{block_pallas.1} parent=1 // pred_region
      _
    $region17: #{block_pallas.1} parent=1 // pred_fallthru
      _
    // Predicated region
    $region18: #{block_pallas.1} parent=1 // pred_check
      _
    $region19: #{block_pallas.1} parent=1 // pred_check_branch
      %30 = sbr.rel (0) target = $region21
    $region20: #{block_pallas.1} parent=1 // pred_region
      _
    $region21: #{block_pallas.1} parent=1 // pred_fallthru
      _
    // Predicated region
    $region22: #{block_pallas.1} parent=1 // pred_check
      _
    $region23: #{block_pallas.1} parent=1 // pred_check_branch
      %32 = sbr.rel (0) target = $region25
    $region24: #{block_pallas.1} parent=1 // pred_region
      _
    $region25: #{block_pallas.1} parent=1 // pred_fallthru
      _
    // Predicated region
    $region26: #{block_pallas.1} parent=1 // pred_check
      _
    $region27: #{block_pallas.1} parent=1 // pred_check_branch
      %34 = sbr.rel (0) target = $region29
    $region28: #{block_pallas.1} parent=1 // pred_region
      _
    $region29: #{block_pallas.1} parent=1 // pred_fallthru
      _
    // Predicated region
    $region30: #{block_pallas.1} parent=1 // pred_check
      _
    $region31: #{block_pallas.1} parent=1 // pred_check_branch
      %36 = sbr.rel (0) target = $region33
    $region32: #{block_pallas.1} parent=1 // pred_region
      _
    $region33: #{block_pallas.1} parent=1 // pred_fallthru
      _
    // Predicated region
    $region34: #{block_pallas.1} parent=1 // pred_check
      _
    $region35: #{block_pallas.1} parent=1 // pred_check_branch
      %38 = sbr.rel (0) target = $region37
    $region36: #{block_pallas.1} parent=1 // pred_region
      _
    $region37: #{block_pallas.1} parent=1 // pred_fallthru
      _
    // Predicated region
    $region38: #{block_pallas.1} parent=1 // pred_check
      _
    $region39: #{block_pallas.1} parent=1 // pred_check_branch
      %40 = sbr.rel (0) target = $region41
    $region40: #{block_pallas.1} parent=1 // pred_region
      _
    $region41: #{block_pallas.1} parent=1 // pred_fallthru
      _
    // Predicated region
    $region42: #{block_pallas.1} parent=1 // pred_check
      _
    $region43: #{block_pallas.1} parent=1 // pred_check_branch
      %42 = sbr.rel (0) target = $region45
    $region44: #{block_pallas.1} parent=1 // pred_region
      _
    $region45: #{block_pallas.1} parent=1 // pred_fallthru
      _
    // Predicated region
    $region46: #{block_pallas.1} parent=1 // pred_check
      _
    $region47: #{block_pallas.1} parent=1 // pred_check_branch
      %44 = sbr.rel (0) target = $region49
    $region48: #{block_pallas.1} parent=1 // pred_region
      _
    $region49: #{block_pallas.1} parent=1 // pred_fallthru
      _
    // Predicated region
    $region50: #{block_pallas.1} parent=1 // pred_check
      _
    $region51: #{block_pallas.1} parent=1 // pred_check_branch
      %46 = sbr.rel (0) target = $region53
    $region52: #{block_pallas.1} parent=1 // pred_region
      _
    $region53: #{block_pallas.1} parent=1 // pred_fallthru
      _
    // Predicated region
    $region54: #{block_pallas.1} parent=1 // pred_check
      _
    $region55: #{block_pallas.1} parent=1 // pred_check_branch
      %48 = sbr.rel (0) target = $region57
    $region56: #{block_pallas.1} parent=1 // pred_region
      _
    $region57: #{block_pallas.1} parent=1 // pred_fallthru
      _
    // Predicated region
    $region58: #{block_pallas.1} parent=1 // pred_check
      _
    $region59: #{block_pallas.1} parent=1 // pred_check_branch
      %50 = sbr.rel (0) target = $region61
    $region60: #{block_pallas.1} parent=1 // pred_region
      _
    $region61: #{block_pallas.1} parent=1 // pred_fallthru
      _
    %v51 = vld [vmem:[%s0] sm:$0xff]
    %v52 = vld [vmem:[%s0 + $0x8] sm:$0xff]
    %v53 = vld [vmem:[%s1] sm:$0x1]
    %v54 = vld [vmem:[%s2] sm:$0x1]
    %vm55 = vcmask 261120
    %v56 = vsel %vm55, %v51, 0.0
    %57 = vadd.xlane.f32.xlu0 %v56
    %v58 = vpop.xlane.xlu0 %57
    %v59 = vsel %vm55, %v52, 0.0
    %60 = vadd.xlane.f32.xlu0 %v59
    %v61 = vpop.xlane.xlu0 %60
    %v62 = vrcp.pop 32.0
    %v63 = vmul.f32 %v58, %v62
    %v64 = vmul.f32 %v61, %v62
    %v65 = vsub.f32 %v51, %v63
    %v66 = vsub.f32 %v52, %v64
    %v67 = vmul.f32 %v65, %v65
    %v68 = vmul.f32 %v66, %v66
    %v69 = vsel %vm55, %v67, 0.0
    %70 = vadd.xlane.f32.xlu0 %v69
    %v71 = vpop.xlane.xlu0 %70
    %v72 = vsel %vm55, %v68, 0.0
    %73 = vadd.xlane.f32.xlu0 %v72
    %v74 = vpop.xlane.xlu0 %73
    %v75 = vmul.f32 %v71, %v62
    %v76 = vmul.f32 %v74, %v62
    %v77 = vadd.f32 %v75, 1e-05
    %v78 = vadd.f32 %v76, 1e-05
    %v79 = vrsqrt.pop %v77
    %v80 = vrsqrt.pop %v78
    %v81 = vmul.f32 %v65, %v79
    %v82 = vmul.f32 %v66, %v80
    %v84 = vlaneseq
    %v85 = vshrl.u32 %v84, 7
    %v86 = vsub.s32 0, %v85
    %v87 = vrot.slane %v53, %v86
    %v89 = vmul.f32 %v81, %v87
    %v90 = vmul.f32 %v82, %v87
    %v92 = vlaneseq
    %v93 = vshrl.u32 %v92, 7
    %v94 = vsub.s32 0, %v93
    %v95 = vrot.slane %v54, %v94
    %v97 = vadd.f32 %v89, %v95
    %v98 = vadd.f32 %v90, %v95
    %v99 = vld [vmem:[%s3] sm:$0xff]
    %v100 = vld [vmem:[%s3 + $0x8] sm:$0xff]
    %v101 = vld [vmem:[%s3 + $0x10] sm:$0xff]
    %v102 = vld [vmem:[%s3 + $0x18] sm:$0xff]
    %v104 = vsel %vm55, %v97, 0
    %v107 = vsel %vm55, %v98, 0
    %109 = vmatprep.subr.mxu0 0.0
    %110 = vmatpush1.msra.mxu0 %v99
    %111 = vmatprep.subr.mxu0 0.0
    %112 = vmatpush1.msra.mxu0 %v100
    %113 = vmatprep.subr.mxu0 0.0
    %114 = vmatpush1.msra.mxu0 %v101
    %115 = vmatprep.subr.mxu0 0.0
    %116 = vmatpush1.msra.mxu0 %v102
    %117 = vmatprep.subr.mxu0 0.0
    %118 = vmatpush1.msra.mxu0 0.0
    %119 = vmatprep.subr.mxu0 0.0
    %120 = vmatpush1.msra.mxu0 0.0
    %121 = vmatprep.subr.mxu0 0.0
    %122 = vmatpush1.msra.mxu0 0.0
    %123 = vmatprep.subr.mxu0 0.0
    %124 = vmatpush1.msra.mxu0 0.0
    %125 = vmatprep.subr.mxu0 0.0
    %126 = vmatpush1.msra.mxu0 0.0
    %127 = vmatprep.subr.mxu0 0.0
    %128 = vmatpush1.msra.mxu0 0.0
    %129 = vmatprep.subr.mxu0 0.0
    %130 = vmatpush1.msra.mxu0 0.0
    %131 = vmatprep.subr.mxu0 0.0
    %132 = vmatpush1.msra.mxu0 0.0
    %133 = vmatprep.subr.mxu0 0.0
    %134 = vmatpush1.msra.mxu0 0.0
    %135 = vmatprep.subr.mxu0 0.0
    %136 = vmatpush1.msra.mxu0 0.0
    %137 = vmatprep.subr.mxu0 0.0
    %138 = vmatpush1.msra.mxu0 0.0
    %139 = vmatprep.subr.mxu0 0.0
    %140 = vmatpush1.msra.mxu0 0.0
    %141 = vmatprep.subr.mxu0 0.0
    %142 = vmatpush1.msra.mxu0 0.0
    %143 = vmatprep.subr.mxu0 0.0
    %144 = vmatpush1.msra.mxu0 0.0
    %145 = vmatprep.subr.mxu0 0.0
    %146 = vmatpush1.msra.mxu0 0.0
    %147 = vmatprep.subr.mxu0 0.0
    %148 = vmatpush1.msra.mxu0 0.0
    %149 = vmatprep.subr.mxu0 0.0
    %150 = vmatpush1.msra.mxu0 0.0
    %151 = vmatprep.subr.mxu0 0.0
    %152 = vmatpush1.msra.mxu0 0.0
    %153 = vmatprep.subr.mxu0 0.0
    %154 = vmatpush1.msra.mxu0 0.0
    %155 = vmatprep.subr.mxu0 0.0
    %156 = vmatpush1.msra.mxu0 0.0
    %157 = vmatprep.subr.mxu0 0.0
    %158 = vmatpush1.msra.mxu0 0.0
    %159 = vmatprep.subr.mxu0 0.0
    %160 = vmatpush1.msra.mxu0 0.0
    %161 = vmatprep.subr.mxu0 0.0
    %162 = vmatpush1.msra.mxu0 0.0
    %163 = vmatprep.subr.mxu0 0.0
    %164 = vmatpush1.msra.mxu0 0.0
    %165 = vmatprep.subr.mxu0 0.0
    %166 = vmatpush1.msra.mxu0 0.0
    %167 = vmatprep.subr.mxu0 0.0
    %168 = vmatpush1.msra.mxu0 0.0
    %169 = vmatprep.subr.mxu0 0.0
    %170 = vmatpush1.msra.mxu0 0.0
    %171 = vmatprep.subr.mxu0 0.0
    %172 = vmatpush1.msra.mxu0 0.0
    %173 = vmatprep.mubr.f32.mxu0 0.0
    %174 = vmatmul.mubr.f32.gmra.mrb[0].mxu0 %v104
    %v175 = vpop.f32.mrb[0].mxu0
    %v176 = vadd.f32 0.0, %v175
    %v177 = vpop.f32.mrb[0].mxu0
    %178 = vmatprep.mubr.f32.mxu0 0.0
    %179 = vmatmul.mubr.f32.gmra.mrb[0].mxu0 %v107
    %v180 = vpop.f32.mrb[0].mxu0
    %v181 = vadd.f32 0.0, %v180
    %v182 = vpop.f32.mrb[0].mxu0
    %183 = vdwg.mxu0
    %v184 = vld [vmem:[%s12] sm:$0xff]
    %v185 = vld [vmem:[%s12 + $0x8] sm:$0xff]
    %v186 = vld [vmem:[%s12 + $0x10] sm:$0xff]
    %v187 = vld [vmem:[%s12 + $0x18] sm:$0xff]
    %v188 = vld [vmem:[%s13] sm:$0xff]
    %v189 = vld [vmem:[%s13 + $0x8] sm:$0xff]
    %v190 = vld [vmem:[%s13 + $0x10] sm:$0xff]
    %v191 = vld [vmem:[%s13 + $0x18] sm:$0xff]
    %v192 = vld [vmem:[%s13 + $0x20] sm:$0xff]
    %v193 = vld [vmem:[%s13 + $0x28] sm:$0xff]
    %v194 = vld [vmem:[%s13 + $0x30] sm:$0xff]
    %v195 = vld [vmem:[%s13 + $0x38] sm:$0xff]
    %v196 = vld [vmem:[%s14] sm:$0xff]
    %v197 = vld [vmem:[%s14 + $0x8] sm:$0xff]
    %v198 = vld [vmem:[%s14 + $0x10] sm:$0xff]
    %v199 = vld [vmem:[%s14 + $0x18] sm:$0xff]
    %v200 = vld [vmem:[%s14 + $0x20] sm:$0xff]
    %v201 = vld [vmem:[%s14 + $0x28] sm:$0xff]
    %v202 = vld [vmem:[%s14 + $0x30] sm:$0xff]
    %v203 = vld [vmem:[%s14 + $0x38] sm:$0xff]
    %205 = vrot.lane.b32.xlu0 %v176, 96
    %v206 = vpop.permute.xlu0 %205
    %208 = vxpose.xlu0.b32.start [1/16] %v206, 128
    %209 = vxpose.xlu0.b32.cont [2/16] 0.0, 128
    %210 = vxpose.xlu0.b32.cont [3/16] 0.0, 128
    %211 = vxpose.xlu0.b32.cont [4/16] 0.0, 128
    %212 = vxpose.xlu0.b32.cont [5/16] 0.0, 128
    %213 = vxpose.xlu0.b32.cont [6/16] 0.0, 128
    %214 = vxpose.xlu0.b32.cont [7/16] 0.0, 128
    %215 = vxpose.xlu0.b32.cont [8/16] 0.0, 128
    %216 = vxpose.xlu0.b32.cont [9/16] 0.0, 128
    %217 = vxpose.xlu0.b32.cont [10/16] 0.0, 128
    %218 = vxpose.xlu0.b32.cont [11/16] 0.0, 128
    %219 = vxpose.xlu0.b32.cont [12/16] 0.0, 128
    %220 = vxpose.xlu0.b32.cont [13/16] 0.0, 128
    %221 = vxpose.xlu0.b32.cont [14/16] 0.0, 128
    %222 = vxpose.xlu0.b32.cont [15/16] 0.0, 128
    %223 = vxpose.xlu0.b32.end [16/16] 0.0, 128
    %v224 = vpop.trf.xlu0
    %v225 = vpop.trf.xlu0
    %v226 = vpop.trf.xlu0
    %v227 = vpop.trf.xlu0
    %v228 = vpop.trf.xlu0
    %v229 = vpop.trf.xlu0
    %v230 = vpop.trf.xlu0
    %v231 = vpop.trf.xlu0
    %v232 = vpop.trf.xlu0
    %v233 = vpop.trf.xlu0
    %v234 = vpop.trf.xlu0
    %v235 = vpop.trf.xlu0
    %v236 = vpop.trf.xlu0
    %v237 = vpop.trf.xlu0
    %v238 = vpop.trf.xlu0
    %v239 = vpop.trf.xlu0
    %244 = vrot.lane.b32.xlu0 %v224, 8
    %v245 = vpop.permute.xlu0 %244
    %246 = vrot.lane.b32.xlu0 %v225, 8
    %v247 = vpop.permute.xlu0 %246
    %248 = vrot.lane.b32.xlu0 %v226, 8
    %v249 = vpop.permute.xlu0 %248
    %250 = vrot.lane.b32.xlu0 %v227, 8
    %v251 = vpop.permute.xlu0 %250
    %256 = vrot.lane.b32.xlu0 %v224, 16
    %v257 = vpop.permute.xlu0 %256
    %258 = vrot.lane.b32.xlu0 %v225, 16
    %v259 = vpop.permute.xlu0 %258
    %260 = vrot.lane.b32.xlu0 %v226, 16
    %v261 = vpop.permute.xlu0 %260
    %262 = vrot.lane.b32.xlu0 %v227, 16
    %v263 = vpop.permute.xlu0 %262
    %268 = vrot.lane.b32.xlu0 %v224, 24
    %v269 = vpop.permute.xlu0 %268
    %270 = vrot.lane.b32.xlu0 %v225, 24
    %v271 = vpop.permute.xlu0 %270
    %272 = vrot.lane.b32.xlu0 %v226, 24
    %v273 = vpop.permute.xlu0 %272
    %274 = vrot.lane.b32.xlu0 %v227, 24
    %v275 = vpop.permute.xlu0 %274
    %280 = vrot.lane.b32.xlu0 %v224, 32
    %v281 = vpop.permute.xlu0 %280
    %282 = vrot.lane.b32.xlu0 %v225, 32
    %v283 = vpop.permute.xlu0 %282
    %284 = vrot.lane.b32.xlu0 %v226, 32
    %v285 = vpop.permute.xlu0 %284
    %286 = vrot.lane.b32.xlu0 %v227, 32
    %v287 = vpop.permute.xlu0 %286
    %292 = vrot.lane.b32.xlu0 %v224, 40
    %v293 = vpop.permute.xlu0 %292
    %294 = vrot.lane.b32.xlu0 %v225, 40
    %v295 = vpop.permute.xlu0 %294
    %296 = vrot.lane.b32.xlu0 %v226, 40
    %v297 = vpop.permute.xlu0 %296
    %298 = vrot.lane.b32.xlu0 %v227, 40
    %v299 = vpop.permute.xlu0 %298
    %304 = vrot.lane.b32.xlu0 %v224, 48
    %v305 = vpop.permute.xlu0 %304
    %306 = vrot.lane.b32.xlu0 %v225, 48
    %v307 = vpop.permute.xlu0 %306
    %308 = vrot.lane.b32.xlu0 %v226, 48
    %v309 = vpop.permute.xlu0 %308
    %310 = vrot.lane.b32.xlu0 %v227, 48
    %v311 = vpop.permute.xlu0 %310
    %316 = vrot.lane.b32.xlu0 %v224, 56
    %v317 = vpop.permute.xlu0 %316
    %318 = vrot.lane.b32.xlu0 %v225, 56
    %v319 = vpop.permute.xlu0 %318
    %320 = vrot.lane.b32.xlu0 %v226, 56
    %v321 = vpop.permute.xlu0 %320
    %322 = vrot.lane.b32.xlu0 %v227, 56
    %v323 = vpop.permute.xlu0 %322
    %vm328 = vcmask 64512
    %v329 = vsel %vm328, %v224, %v245
    %v330 = vsel %vm328, %v225, %v247
    %v331 = vsel %vm328, %v226, %v249
    %v332 = vsel %vm328, %v227, %v251
    %vm333 = vcmask 130048
    %v334 = vsel %vm333, %v329, %v257
    %v335 = vsel %vm333, %v330, %v259
    %v336 = vsel %vm333, %v331, %v261
    %v337 = vsel %vm333, %v332, %v263
    %vm338 = vcmask 195584
    %v339 = vsel %vm338, %v334, %v269
    %v340 = vsel %vm338, %v335, %v271
    %v341 = vsel %vm338, %v336, %v273
    %v342 = vsel %vm338, %v337, %v275
    %v343 = vsel %vm55, %v339, %v281
    %v344 = vsel %vm55, %v340, %v283
    %v345 = vsel %vm55, %v341, %v285
    %v346 = vsel %vm55, %v342, %v287
    %vm347 = vcmask 326656
    %v348 = vsel %vm347, %v343, %v293
    %v349 = vsel %vm347, %v344, %v295
    %v350 = vsel %vm347, %v345, %v297
    %v351 = vsel %vm347, %v346, %v299
    %vm352 = vcmask 392192
    %v353 = vsel %vm352, %v348, %v305
    %v354 = vsel %vm352, %v349, %v307
    %v355 = vsel %vm352, %v350, %v309
    %v356 = vsel %vm352, %v351, %v311
    %vm357 = vcmask 457728
    %v358 = vsel %vm357, %v353, %v317
    %v359 = vsel %vm357, %v354, %v319
    %v360 = vsel %vm357, %v355, %v321
    %v361 = vsel %vm357, %v356, %v323
    %v362 = vmul.f32 %v358, %v184
    %v363 = vmul.f32 %v359, %v185
    %v364 = vmul.f32 %v360, %v186
    %v365 = vmul.f32 %v361, %v187
    %v366 = vsel %vm55, %v176, 0
    %368 = vmatprep.subr.mxu0 0.0
    %369 = vmatpush1.msra.mxu0 %v362
    %370 = vmatprep.subr.mxu0 0.0
    %371 = vmatpush1.msra.mxu0 %v363
    %372 = vmatprep.subr.mxu0 0.0
    %373 = vmatpush1.msra.mxu0 %v364
    %374 = vmatprep.subr.mxu0 0.0
    %375 = vmatpush1.msra.mxu0 %v365
    %376 = vmatprep.subr.mxu0 0.0
    %377 = vmatpush1.msra.mxu0 0.0
    %378 = vmatprep.subr.mxu0 0.0
    %379 = vmatpush1.msra.mxu0 0.0
    %380 = vmatprep.subr.mxu0 0.0
    %381 = vmatpush1.msra.mxu0 0.0
    %382 = vmatprep.subr.mxu0 0.0
    %383 = vmatpush1.msra.mxu0 0.0
    %384 = vmatprep.subr.mxu0 0.0
    %385 = vmatpush1.msra.mxu0 0.0
    %386 = vmatprep.subr.mxu0 0.0
    %387 = vmatpush1.msra.mxu0 0.0
    %388 = vmatprep.subr.mxu0 0.0
    %389 = vmatpush1.msra.mxu0 0.0
    %390 = vmatprep.subr.mxu0 0.0
    %391 = vmatpush1.msra.mxu0 0.0
    %392 = vmatprep.subr.mxu0 0.0
    %393 = vmatpush1.msra.mxu0 0.0
    %394 = vmatprep.subr.mxu0 0.0
    %395 = vmatpush1.msra.mxu0 0.0
    %396 = vmatprep.subr.mxu0 0.0
    %397 = vmatpush1.msra.mxu0 0.0
    %398 = vmatprep.subr.mxu0 0.0
    %399 = vmatpush1.msra.mxu0 0.0
    %400 = vmatprep.subr.mxu0 0.0
    %401 = vmatpush1.msra.mxu0 0.0
    %402 = vmatprep.subr.mxu0 0.0
    %403 = vmatpush1.msra.mxu0 0.0
    %404 = vmatprep.subr.mxu0 0.0
    %405 = vmatpush1.msra.mxu0 0.0
    %406 = vmatprep.subr.mxu0 0.0
    %407 = vmatpush1.msra.mxu0 0.0
    %408 = vmatprep.subr.mxu0 0.0
    %409 = vmatpush1.msra.mxu0 0.0
    %410 = vmatprep.subr.mxu0 0.0
    %411 = vmatpush1.msra.mxu0 0.0
    %412 = vmatprep.subr.mxu0 0.0
    %413 = vmatpush1.msra.mxu0 0.0
    %414 = vmatprep.subr.mxu0 0.0
    %415 = vmatpush1.msra.mxu0 0.0
    %416 = vmatprep.subr.mxu0 0.0
    %417 = vmatpush1.msra.mxu0 0.0
    %418 = vmatprep.subr.mxu0 0.0
    %419 = vmatpush1.msra.mxu0 0.0
    %420 = vmatprep.subr.mxu0 0.0
    %421 = vmatpush1.msra.mxu0 0.0
    %422 = vmatprep.subr.mxu0 0.0
    %423 = vmatpush1.msra.mxu0 0.0
    %424 = vmatprep.subr.mxu0 0.0
    %425 = vmatpush1.msra.mxu0 0.0
    %426 = vmatprep.subr.mxu0 0.0
    %427 = vmatpush1.msra.mxu0 0.0
    %428 = vmatprep.subr.mxu0 0.0
    %429 = vmatpush1.msra.mxu0 0.0
    %430 = vmatprep.subr.mxu0 0.0
    %431 = vmatpush1.msra.mxu0 0.0
    %432 = vmatprep.mubr.f32.mxu0 0.0
    %433 = vmatmul.mubr.f32.gmra.mrb[0].mxu0 %v366
    %v434 = vpop.f32.mrb[0].mxu0
    %v435 = vadd.f32 0.0, %v434
    %v436 = vpop.f32.mrb[0].mxu0
    %437 = vdwg.mxu0
    %vm438 = vcmask 523264
    %v439 = vsel %vm438, %v435, -inf
    %440 = vmax.xlane.f32.xlu0 %v439
    %v441 = vpop.xlane.xlu0 %440
    %v442 = vsub.f32 %v435, %v441
    %v443 = vmul.f32 %v442, 1.442695
    %v444 = vpow.pop %v443
    %v446 = vsel %vm438, %v444, 0
    %448 = vmatprep.subr.mxu0 0.0
    %449 = vmatpush1.msra.mxu0 %v196
    %450 = vmatprep.subr.mxu0 0.0
    %451 = vmatpush1.msra.mxu0 %v197
    %452 = vmatprep.subr.mxu0 0.0
    %453 = vmatpush1.msra.mxu0 %v198
    %454 = vmatprep.subr.mxu0 0.0
    %455 = vmatpush1.msra.mxu0 %v199
    %456 = vmatprep.subr.mxu0 0.0
    %457 = vmatpush1.msra.mxu0 %v200
    %458 = vmatprep.subr.mxu0 0.0
    %459 = vmatpush1.msra.mxu0 %v201
    %460 = vmatprep.subr.mxu0 0.0
    %461 = vmatpush1.msra.mxu0 %v202
    %462 = vmatprep.subr.mxu0 0.0
    %463 = vmatpush1.msra.mxu0 %v203
    %464 = vmatprep.subr.mxu0 0.0
    %465 = vmatpush1.msra.mxu0 0.0
    %466 = vmatprep.subr.mxu0 0.0
    %467 = vmatpush1.msra.mxu0 0.0
    %468 = vmatprep.subr.mxu0 0.0
    %469 = vmatpush1.msra.mxu0 0.0
    %470 = vmatprep.subr.mxu0 0.0
    %471 = vmatpush1.msra.mxu0 0.0
    %472 = vmatprep.subr.mxu0 0.0
    %473 = vmatpush1.msra.mxu0 0.0
    %474 = vmatprep.subr.mxu0 0.0
    %475 = vmatpush1.msra.mxu0 0.0
    %476 = vmatprep.subr.mxu0 0.0
    %477 = vmatpush1.msra.mxu0 0.0
    %478 = vmatprep.subr.mxu0 0.0
    %479 = vmatpush1.msra.mxu0 0.0
    %480 = vmatprep.subr.mxu0 0.0
    %481 = vmatpush1.msra.mxu0 0.0
    %482 = vmatprep.subr.mxu0 0.0
    %483 = vmatpush1.msra.mxu0 0.0
    %484 = vmatprep.subr.mxu0 0.0
    %485 = vmatpush1.msra.mxu0 0.0
    %486 = vmatprep.subr.mxu0 0.0
    %487 = vmatpush1.msra.mxu0 0.0
    %488 = vmatprep.subr.mxu0 0.0
    %489 = vmatpush1.msra.mxu0 0.0
    %490 = vmatprep.subr.mxu0 0.0
    %491 = vmatpush1.msra.mxu0 0.0
    %492 = vmatprep.subr.mxu0 0.0
    %493 = vmatpush1.msra.mxu0 0.0
    %494 = vmatprep.subr.mxu0 0.0
    %495 = vmatpush1.msra.mxu0 0.0
    %496 = vmatprep.subr.mxu0 0.0
    %497 = vmatpush1.msra.mxu0 0.0
    %498 = vmatprep.subr.mxu0 0.0
    %499 = vmatpush1.msra.mxu0 0.0
    %500 = vmatprep.subr.mxu0 0.0
    %501 = vmatpush1.msra.mxu0 0.0
    %502 = vmatprep.subr.mxu0 0.0
    %503 = vmatpush1.msra.mxu0 0.0
    %504 = vmatprep.subr.mxu0 0.0
    %505 = vmatpush1.msra.mxu0 0.0
    %506 = vmatprep.subr.mxu0 0.0
    %507 = vmatpush1.msra.mxu0 0.0
    %508 = vmatprep.subr.mxu0 0.0
    %509 = vmatpush1.msra.mxu0 0.0
    %510 = vmatprep.subr.mxu0 0.0
    %511 = vmatpush1.msra.mxu0 0.0
    %512 = vmatprep.mubr.f32.mxu0 0.0
    %513 = vmatmul.mubr.f32.gmra.mrb[0].mxu0 %v446
    %v514 = vpop.f32.mrb[0].mxu0
    %v515 = vadd.f32 0.0, %v514
    %v516 = vpop.f32.mrb[0].mxu0
    %517 = vdwg.mxu0
    %v518 = vrcp.pop %v515
    %v519 = vmul.f32 %v444, %v518
    %528 = vrot.lane.b32.xlu0 %v188, 64
    %v529 = vpop.permute.xlu0 %528
    %530 = vrot.lane.b32.xlu0 %v189, 64
    %v531 = vpop.permute.xlu0 %530
    %532 = vrot.lane.b32.xlu0 %v190, 64
    %v533 = vpop.permute.xlu0 %532
    %534 = vrot.lane.b32.xlu0 %v191, 64
    %v535 = vpop.permute.xlu0 %534
    %536 = vrot.lane.b32.xlu0 %v192, 64
    %v537 = vpop.permute.xlu0 %536
    %538 = vrot.lane.b32.xlu0 %v193, 64
    %v539 = vpop.permute.xlu0 %538
    %540 = vrot.lane.b32.xlu0 %v194, 64
    %v541 = vpop.permute.xlu0 %540
    %542 = vrot.lane.b32.xlu0 %v195, 64
    %v543 = vpop.permute.xlu0 %542
    %v552 = vmul.f32 %v176, %v529
    %v553 = vmul.f32 %v176, %v531
    %v554 = vmul.f32 %v176, %v533
    %v555 = vmul.f32 %v176, %v535
    %v556 = vmul.f32 %v176, %v537
    %v557 = vmul.f32 %v176, %v539
    %v558 = vmul.f32 %v176, %v541
    %v559 = vmul.f32 %v176, %v543
    %568 = vrot.lane.b32.xlu0 %v552, 64
    %v569 = vpop.permute.xlu0 %568
    %570 = vrot.lane.b32.xlu0 %v553, 64
    %v571 = vpop.permute.xlu0 %570
    %572 = vrot.lane.b32.xlu0 %v554, 64
    %v573 = vpop.permute.xlu0 %572
    %574 = vrot.lane.b32.xlu0 %v555, 64
    %v575 = vpop.permute.xlu0 %574
    %576 = vrot.lane.b32.xlu0 %v556, 64
    %v577 = vpop.permute.xlu0 %576
    %578 = vrot.lane.b32.xlu0 %v557, 64
    %v579 = vpop.permute.xlu0 %578
    %580 = vrot.lane.b32.xlu0 %v558, 64
    %v581 = vpop.permute.xlu0 %580
    %582 = vrot.lane.b32.xlu0 %v559, 64
    %v583 = vpop.permute.xlu0 %582
    %v593 = vsel %vm438, %v519, 0
    %595 = vmatprep.subr.mxu0 0.0
    %596 = vmatpush1.msra.mxu0 %v569
    %597 = vmatprep.subr.mxu0 0.0
    %598 = vmatpush1.msra.mxu0 %v571
    %599 = vmatprep.subr.mxu0 0.0
    %600 = vmatpush1.msra.mxu0 %v573
    %601 = vmatprep.subr.mxu0 0.0
    %602 = vmatpush1.msra.mxu0 %v575
    %603 = vmatprep.subr.mxu0 0.0
    %604 = vmatpush1.msra.mxu0 %v577
    %605 = vmatprep.subr.mxu0 0.0
    %606 = vmatpush1.msra.mxu0 %v579
    %607 = vmatprep.subr.mxu0 0.0
    %608 = vmatpush1.msra.mxu0 %v581
    %609 = vmatprep.subr.mxu0 0.0
    %610 = vmatpush1.msra.mxu0 %v583
    %611 = vmatprep.subr.mxu0 0.0
    %612 = vmatpush1.msra.mxu0 0.0
    %613 = vmatprep.subr.mxu0 0.0
    %614 = vmatpush1.msra.mxu0 0.0
    %615 = vmatprep.subr.mxu0 0.0
    %616 = vmatpush1.msra.mxu0 0.0
    %617 = vmatprep.subr.mxu0 0.0
    %618 = vmatpush1.msra.mxu0 0.0
    %619 = vmatprep.subr.mxu0 0.0
    %620 = vmatpush1.msra.mxu0 0.0
    %621 = vmatprep.subr.mxu0 0.0
    %622 = vmatpush1.msra.mxu0 0.0
    %623 = vmatprep.subr.mxu0 0.0
    %624 = vmatpush1.msra.mxu0 0.0
    %625 = vmatprep.subr.mxu0 0.0
    %626 = vmatpush1.msra.mxu0 0.0
    %627 = vmatprep.subr.mxu0 0.0
    %628 = vmatpush1.msra.mxu0 0.0
    %629 = vmatprep.subr.mxu0 0.0
    %630 = vmatpush1.msra.mxu0 0.0
    %631 = vmatprep.subr.mxu0 0.0
    %632 = vmatpush1.msra.mxu0 0.0
    %633 = vmatprep.subr.mxu0 0.0
    %634 = vmatpush1.msra.mxu0 0.0
    %635 = vmatprep.subr.mxu0 0.0
    %636 = vmatpush1.msra.mxu0 0.0
    %637 = vmatprep.subr.mxu0 0.0
    %638 = vmatpush1.msra.mxu0 0.0
    %639 = vmatprep.subr.mxu0 0.0
    %640 = vmatpush1.msra.mxu0 0.0
    %641 = vmatprep.subr.mxu0 0.0
    %642 = vmatpush1.msra.mxu0 0.0
    %643 = vmatprep.subr.mxu0 0.0
    %644 = vmatpush1.msra.mxu0 0.0
    %645 = vmatprep.subr.mxu0 0.0
    %646 = vmatpush1.msra.mxu0 0.0
    %647 = vmatprep.subr.mxu0 0.0
    %648 = vmatpush1.msra.mxu0 0.0
    %649 = vmatprep.subr.mxu0 0.0
    %650 = vmatpush1.msra.mxu0 0.0
    %651 = vmatprep.subr.mxu0 0.0
    %652 = vmatpush1.msra.mxu0 0.0
    %653 = vmatprep.subr.mxu0 0.0
    %654 = vmatpush1.msra.mxu0 0.0
    %655 = vmatprep.subr.mxu0 0.0
    %656 = vmatpush1.msra.mxu0 0.0
    %657 = vmatprep.subr.mxu0 0.0
    %658 = vmatpush1.msra.mxu0 0.0
    %659 = vmatprep.mubr.f32.mxu0 0.0
    %660 = vmatmul.mubr.f32.gmra.mrb[0].mxu0 %v593
    %v661 = vpop.f32.mrb[0].mxu0
    %v662 = vadd.f32 0.0, %v661
    %v663 = vpop.f32.mrb[0].mxu0
    %664 = vdwg.mxu0
    %666 = vrot.lane.b32.xlu0 %v181, 96
    %v667 = vpop.permute.xlu0 %666
    %669 = vxpose.xlu0.b32.start [1/16] %v667, 128
    %670 = vxpose.xlu0.b32.cont [2/16] 0.0, 128
    %671 = vxpose.xlu0.b32.cont [3/16] 0.0, 128
    %672 = vxpose.xlu0.b32.cont [4/16] 0.0, 128
    %673 = vxpose.xlu0.b32.cont [5/16] 0.0, 128
    %674 = vxpose.xlu0.b32.cont [6/16] 0.0, 128
    %675 = vxpose.xlu0.b32.cont [7/16] 0.0, 128
    %676 = vxpose.xlu0.b32.cont [8/16] 0.0, 128
    %677 = vxpose.xlu0.b32.cont [9/16] 0.0, 128
    %678 = vxpose.xlu0.b32.cont [10/16] 0.0, 128
    %679 = vxpose.xlu0.b32.cont [11/16] 0.0, 128
    %680 = vxpose.xlu0.b32.cont [12/16] 0.0, 128
    %681 = vxpose.xlu0.b32.cont [13/16] 0.0, 128
    %682 = vxpose.xlu0.b32.cont [14/16] 0.0, 128
    %683 = vxpose.xlu0.b32.cont [15/16] 0.0, 128
    %684 = vxpose.xlu0.b32.end [16/16] 0.0, 128
    %v685 = vpop.trf.xlu0
    %v686 = vpop.trf.xlu0
    %v687 = vpop.trf.xlu0
    %v688 = vpop.trf.xlu0
    %v689 = vpop.trf.xlu0
    %v690 = vpop.trf.xlu0
    %v691 = vpop.trf.xlu0
    %v692 = vpop.trf.xlu0
    %v693 = vpop.trf.xlu0
    %v694 = vpop.trf.xlu0
    %v695 = vpop.trf.xlu0
    %v696 = vpop.trf.xlu0
    %v697 = vpop.trf.xlu0
    %v698 = vpop.trf.xlu0
    %v699 = vpop.trf.xlu0
    %v700 = vpop.trf.xlu0
    %705 = vrot.lane.b32.xlu0 %v685, 8
    %v706 = vpop.permute.xlu0 %705
    %707 = vrot.lane.b32.xlu0 %v686, 8
    %v708 = vpop.permute.xlu0 %707
    %709 = vrot.lane.b32.xlu0 %v687, 8
    %v710 = vpop.permute.xlu0 %709
    %711 = vrot.lane.b32.xlu0 %v688, 8
    %v712 = vpop.permute.xlu0 %711
    %717 = vrot.lane.b32.xlu0 %v685, 16
    %v718 = vpop.permute.xlu0 %717
    %719 = vrot.lane.b32.xlu0 %v686, 16
    %v720 = vpop.permute.xlu0 %719
    %721 = vrot.lane.b32.xlu0 %v687, 16
    %v722 = vpop.permute.xlu0 %721
    %723 = vrot.lane.b32.xlu0 %v688, 16
    %v724 = vpop.permute.xlu0 %723
    %729 = vrot.lane.b32.xlu0 %v685, 24
    %v730 = vpop.permute.xlu0 %729
    %731 = vrot.lane.b32.xlu0 %v686, 24
    %v732 = vpop.permute.xlu0 %731
    %733 = vrot.lane.b32.xlu0 %v687, 24
    %v734 = vpop.permute.xlu0 %733
    %735 = vrot.lane.b32.xlu0 %v688, 24
    %v736 = vpop.permute.xlu0 %735
    %741 = vrot.lane.b32.xlu0 %v685, 32
    %v742 = vpop.permute.xlu0 %741
    %743 = vrot.lane.b32.xlu0 %v686, 32
    %v744 = vpop.permute.xlu0 %743
    %745 = vrot.lane.b32.xlu0 %v687, 32
    %v746 = vpop.permute.xlu0 %745
    %747 = vrot.lane.b32.xlu0 %v688, 32
    %v748 = vpop.permute.xlu0 %747
    %753 = vrot.lane.b32.xlu0 %v685, 40
    %v754 = vpop.permute.xlu0 %753
    %755 = vrot.lane.b32.xlu0 %v686, 40
    %v756 = vpop.permute.xlu0 %755
    %757 = vrot.lane.b32.xlu0 %v687, 40
    %v758 = vpop.permute.xlu0 %757
    %759 = vrot.lane.b32.xlu0 %v688, 40
    %v760 = vpop.permute.xlu0 %759
    %765 = vrot.lane.b32.xlu0 %v685, 48
    %v766 = vpop.permute.xlu0 %765
    %767 = vrot.lane.b32.xlu0 %v686, 48
    %v768 = vpop.permute.xlu0 %767
    %769 = vrot.lane.b32.xlu0 %v687, 48
    %v770 = vpop.permute.xlu0 %769
    %771 = vrot.lane.b32.xlu0 %v688, 48
    %v772 = vpop.permute.xlu0 %771
    %777 = vrot.lane.b32.xlu0 %v685, 56
    %v778 = vpop.permute.xlu0 %777
    %779 = vrot.lane.b32.xlu0 %v686, 56
    %v780 = vpop.permute.xlu0 %779
    %781 = vrot.lane.b32.xlu0 %v687, 56
    %v782 = vpop.permute.xlu0 %781
    %783 = vrot.lane.b32.xlu0 %v688, 56
    %v784 = vpop.permute.xlu0 %783
    %v789 = vsel %vm328, %v685, %v706
    %v790 = vsel %vm328, %v686, %v708
    %v791 = vsel %vm328, %v687, %v710
    %v792 = vsel %vm328, %v688, %v712
    %v793 = vsel %vm333, %v789, %v718
    %v794 = vsel %vm333, %v790, %v720
    %v795 = vsel %vm333, %v791, %v722
    %v796 = vsel %vm333, %v792, %v724
    %v797 = vsel %vm338, %v793, %v730
    %v798 = vsel %vm338, %v794, %v732
    %v799 = vsel %vm338, %v795, %v734
    %v800 = vsel %vm338, %v796, %v736
    %v801 = vsel %vm55, %v797, %v742
    %v802 = vsel %vm55, %v798, %v744
    %v803 = vsel %vm55, %v799, %v746
    %v804 = vsel %vm55, %v800, %v748
    %v805 = vsel %vm347, %v801, %v754
    %v806 = vsel %vm347, %v802, %v756
    %v807 = vsel %vm347, %v803, %v758
    %v808 = vsel %vm347, %v804, %v760
    %v809 = vsel %vm352, %v805, %v766
    %v810 = vsel %vm352, %v806, %v768
    %v811 = vsel %vm352, %v807, %v770
    %v812 = vsel %vm352, %v808, %v772
    %v813 = vsel %vm357, %v809, %v778
    %v814 = vsel %vm357, %v810, %v780
    %v815 = vsel %vm357, %v811, %v782
    %v816 = vsel %vm357, %v812, %v784
    %v817 = vmul.f32 %v813, %v184
    %v818 = vmul.f32 %v814, %v185
    %v819 = vmul.f32 %v815, %v186
    %v820 = vmul.f32 %v816, %v187
    %v821 = vsel %vm55, %v181, 0
    %823 = vmatprep.subr.mxu0 0.0
    %824 = vmatpush1.msra.mxu0 %v817
    %825 = vmatprep.subr.mxu0 0.0
    %826 = vmatpush1.msra.mxu0 %v818
    %827 = vmatprep.subr.mxu0 0.0
    %828 = vmatpush1.msra.mxu0 %v819
    %829 = vmatprep.subr.mxu0 0.0
    %830 = vmatpush1.msra.mxu0 %v820
    %831 = vmatprep.subr.mxu0 0.0
    %832 = vmatpush1.msra.mxu0 0.0
    %833 = vmatprep.subr.mxu0 0.0
    %834 = vmatpush1.msra.mxu0 0.0
    %835 = vmatprep.subr.mxu0 0.0
    %836 = vmatpush1.msra.mxu0 0.0
    %837 = vmatprep.subr.mxu0 0.0
    %838 = vmatpush1.msra.mxu0 0.0
    %839 = vmatprep.subr.mxu0 0.0
    %840 = vmatpush1.msra.mxu0 0.0
    %841 = vmatprep.subr.mxu0 0.0
    %842 = vmatpush1.msra.mxu0 0.0
    %843 = vmatprep.subr.mxu0 0.0
    %844 = vmatpush1.msra.mxu0 0.0
    %845 = vmatprep.subr.mxu0 0.0
    %846 = vmatpush1.msra.mxu0 0.0
    %847 = vmatprep.subr.mxu0 0.0
    %848 = vmatpush1.msra.mxu0 0.0
    %849 = vmatprep.subr.mxu0 0.0
    %850 = vmatpush1.msra.mxu0 0.0
    %851 = vmatprep.subr.mxu0 0.0
    %852 = vmatpush1.msra.mxu0 0.0
    %853 = vmatprep.subr.mxu0 0.0
    %854 = vmatpush1.msra.mxu0 0.0
    %855 = vmatprep.subr.mxu0 0.0
    %856 = vmatpush1.msra.mxu0 0.0
    %857 = vmatprep.subr.mxu0 0.0
    %858 = vmatpush1.msra.mxu0 0.0
    %859 = vmatprep.subr.mxu0 0.0
    %860 = vmatpush1.msra.mxu0 0.0
    %861 = vmatprep.subr.mxu0 0.0
    %862 = vmatpush1.msra.mxu0 0.0
    %863 = vmatprep.subr.mxu0 0.0
    %864 = vmatpush1.msra.mxu0 0.0
    %865 = vmatprep.subr.mxu0 0.0
    %866 = vmatpush1.msra.mxu0 0.0
    %867 = vmatprep.subr.mxu0 0.0
    %868 = vmatpush1.msra.mxu0 0.0
    %869 = vmatprep.subr.mxu0 0.0
    %870 = vmatpush1.msra.mxu0 0.0
    %871 = vmatprep.subr.mxu0 0.0
    %872 = vmatpush1.msra.mxu0 0.0
    %873 = vmatprep.subr.mxu0 0.0
    %874 = vmatpush1.msra.mxu0 0.0
    %875 = vmatprep.subr.mxu0 0.0
    %876 = vmatpush1.msra.mxu0 0.0
    %877 = vmatprep.subr.mxu0 0.0
    %878 = vmatpush1.msra.mxu0 0.0
    %879 = vmatprep.subr.mxu0 0.0
    %880 = vmatpush1.msra.mxu0 0.0
    %881 = vmatprep.subr.mxu0 0.0
    %882 = vmatpush1.msra.mxu0 0.0
    %883 = vmatprep.subr.mxu0 0.0
    %884 = vmatpush1.msra.mxu0 0.0
    %885 = vmatprep.subr.mxu0 0.0
    %886 = vmatpush1.msra.mxu0 0.0
    %887 = vmatprep.mubr.f32.mxu0 0.0
    %888 = vmatmul.mubr.f32.gmra.mrb[0].mxu0 %v821
    %v889 = vpop.f32.mrb[0].mxu0
    %v890 = vadd.f32 0.0, %v889
    %v891 = vpop.f32.mrb[0].mxu0
    %892 = vdwg.mxu0
    %v893 = vsel %vm438, %v890, -inf
    %894 = vmax.xlane.f32.xlu0 %v893
    %v895 = vpop.xlane.xlu0 %894
    %v896 = vsub.f32 %v890, %v895
    %v897 = vmul.f32 %v896, 1.442695
    %v898 = vpow.pop %v897
    %v900 = vsel %vm438, %v898, 0
    %902 = vmatprep.subr.mxu0 0.0
    %903 = vmatpush1.msra.mxu0 %v196
    %904 = vmatprep.subr.mxu0 0.0
    %905 = vmatpush1.msra.mxu0 %v197
    %906 = vmatprep.subr.mxu0 0.0
    %907 = vmatpush1.msra.mxu0 %v198
    %908 = vmatprep.subr.mxu0 0.0
    %909 = vmatpush1.msra.mxu0 %v199
    %910 = vmatprep.subr.mxu0 0.0
    %911 = vmatpush1.msra.mxu0 %v200
    %912 = vmatprep.subr.mxu0 0.0
    %913 = vmatpush1.msra.mxu0 %v201
    %914 = vmatprep.subr.mxu0 0.0
    %915 = vmatpush1.msra.mxu0 %v202
    %916 = vmatprep.subr.mxu0 0.0
    %917 = vmatpush1.msra.mxu0 %v203
    %918 = vmatprep.subr.mxu0 0.0
    %919 = vmatpush1.msra.mxu0 0.0
    %920 = vmatprep.subr.mxu0 0.0
    %921 = vmatpush1.msra.mxu0 0.0
    %922 = vmatprep.subr.mxu0 0.0
    %923 = vmatpush1.msra.mxu0 0.0
    %924 = vmatprep.subr.mxu0 0.0
    %925 = vmatpush1.msra.mxu0 0.0
    %926 = vmatprep.subr.mxu0 0.0
    %927 = vmatpush1.msra.mxu0 0.0
    %928 = vmatprep.subr.mxu0 0.0
    %929 = vmatpush1.msra.mxu0 0.0
    %930 = vmatprep.subr.mxu0 0.0
    %931 = vmatpush1.msra.mxu0 0.0
    %932 = vmatprep.subr.mxu0 0.0
    %933 = vmatpush1.msra.mxu0 0.0
    %934 = vmatprep.subr.mxu0 0.0
    %935 = vmatpush1.msra.mxu0 0.0
    %936 = vmatprep.subr.mxu0 0.0
    %937 = vmatpush1.msra.mxu0 0.0
    %938 = vmatprep.subr.mxu0 0.0
    %939 = vmatpush1.msra.mxu0 0.0
    %940 = vmatprep.subr.mxu0 0.0
    %941 = vmatpush1.msra.mxu0 0.0
    %942 = vmatprep.subr.mxu0 0.0
    %943 = vmatpush1.msra.mxu0 0.0
    %944 = vmatprep.subr.mxu0 0.0
    %945 = vmatpush1.msra.mxu0 0.0
    %946 = vmatprep.subr.mxu0 0.0
    %947 = vmatpush1.msra.mxu0 0.0
    %948 = vmatprep.subr.mxu0 0.0
    %949 = vmatpush1.msra.mxu0 0.0
    %950 = vmatprep.subr.mxu0 0.0
    %951 = vmatpush1.msra.mxu0 0.0
    %952 = vmatprep.subr.mxu0 0.0
    %953 = vmatpush1.msra.mxu0 0.0
    %954 = vmatprep.subr.mxu0 0.0
    %955 = vmatpush1.msra.mxu0 0.0
    %956 = vmatprep.subr.mxu0 0.0
    %957 = vmatpush1.msra.mxu0 0.0
    %958 = vmatprep.subr.mxu0 0.0
    %959 = vmatpush1.msra.mxu0 0.0
    %960 = vmatprep.subr.mxu0 0.0
    %961 = vmatpush1.msra.mxu0 0.0
    %962 = vmatprep.subr.mxu0 0.0
    %963 = vmatpush1.msra.mxu0 0.0
    %964 = vmatprep.subr.mxu0 0.0
    %965 = vmatpush1.msra.mxu0 0.0
    %966 = vmatprep.mubr.f32.mxu0 0.0
    %967 = vmatmul.mubr.f32.gmra.mrb[0].mxu0 %v900
    %v968 = vpop.f32.mrb[0].mxu0
    %v969 = vadd.f32 0.0, %v968
    %v970 = vpop.f32.mrb[0].mxu0
    %971 = vdwg.mxu0
    %v972 = vrcp.pop %v969
    %v973 = vmul.f32 %v898, %v972
    %v974 = vmul.f32 %v181, %v529
    %v975 = vmul.f32 %v181, %v531
    %v976 = vmul.f32 %v181, %v533
    %v977 = vmul.f32 %v181, %v535
    %v978 = vmul.f32 %v181, %v537
    %v979 = vmul.f32 %v181, %v539
    %v980 = vmul.f32 %v181, %v541
    %v981 = vmul.f32 %v181, %v543
    %990 = vrot.lane.b32.xlu0 %v974, 64
    %v991 = vpop.permute.xlu0 %990
    %992 = vrot.lane.b32.xlu0 %v975, 64
    %v993 = vpop.permute.xlu0 %992
    %994 = vrot.lane.b32.xlu0 %v976, 64
    %v995 = vpop.permute.xlu0 %994
    %996 = vrot.lane.b32.xlu0 %v977, 64
    %v997 = vpop.permute.xlu0 %996
    %998 = vrot.lane.b32.xlu0 %v978, 64
    %v999 = vpop.permute.xlu0 %998
    %1000 = vrot.lane.b32.xlu0 %v979, 64
    %v1001 = vpop.permute.xlu0 %1000
    %1002 = vrot.lane.b32.xlu0 %v980, 64
    %v1003 = vpop.permute.xlu0 %1002
    %1004 = vrot.lane.b32.xlu0 %v981, 64
    %v1005 = vpop.permute.xlu0 %1004
    %v1015 = vsel %vm438, %v973, 0
    %1017 = vmatprep.subr.mxu0 0.0
    %1018 = vmatpush1.msra.mxu0 %v991
    %1019 = vmatprep.subr.mxu0 0.0
    %1020 = vmatpush1.msra.mxu0 %v993
    %1021 = vmatprep.subr.mxu0 0.0
    %1022 = vmatpush1.msra.mxu0 %v995
    %1023 = vmatprep.subr.mxu0 0.0
    %1024 = vmatpush1.msra.mxu0 %v997
    %1025 = vmatprep.subr.mxu0 0.0
    %1026 = vmatpush1.msra.mxu0 %v999
    %1027 = vmatprep.subr.mxu0 0.0
    %1028 = vmatpush1.msra.mxu0 %v1001
    %1029 = vmatprep.subr.mxu0 0.0
    %1030 = vmatpush1.msra.mxu0 %v1003
    %1031 = vmatprep.subr.mxu0 0.0
    %1032 = vmatpush1.msra.mxu0 %v1005
    %1033 = vmatprep.subr.mxu0 0.0
    %1034 = vmatpush1.msra.mxu0 0.0
    %1035 = vmatprep.subr.mxu0 0.0
    %1036 = vmatpush1.msra.mxu0 0.0
    %1037 = vmatprep.subr.mxu0 0.0
    %1038 = vmatpush1.msra.mxu0 0.0
    %1039 = vmatprep.subr.mxu0 0.0
    %1040 = vmatpush1.msra.mxu0 0.0
    %1041 = vmatprep.subr.mxu0 0.0
    %1042 = vmatpush1.msra.mxu0 0.0
    %1043 = vmatprep.subr.mxu0 0.0
    %1044 = vmatpush1.msra.mxu0 0.0
    %1045 = vmatprep.subr.mxu0 0.0
    %1046 = vmatpush1.msra.mxu0 0.0
    %1047 = vmatprep.subr.mxu0 0.0
    %1048 = vmatpush1.msra.mxu0 0.0
    %1049 = vmatprep.subr.mxu0 0.0
    %1050 = vmatpush1.msra.mxu0 0.0
    %1051 = vmatprep.subr.mxu0 0.0
    %1052 = vmatpush1.msra.mxu0 0.0
    %1053 = vmatprep.subr.mxu0 0.0
    %1054 = vmatpush1.msra.mxu0 0.0
    %1055 = vmatprep.subr.mxu0 0.0
    %1056 = vmatpush1.msra.mxu0 0.0
    %1057 = vmatprep.subr.mxu0 0.0
    %1058 = vmatpush1.msra.mxu0 0.0
    %1059 = vmatprep.subr.mxu0 0.0
    %1060 = vmatpush1.msra.mxu0 0.0
    %1061 = vmatprep.subr.mxu0 0.0
    %1062 = vmatpush1.msra.mxu0 0.0
    %1063 = vmatprep.subr.mxu0 0.0
    %1064 = vmatpush1.msra.mxu0 0.0
    %1065 = vmatprep.subr.mxu0 0.0
    %1066 = vmatpush1.msra.mxu0 0.0
    %1067 = vmatprep.subr.mxu0 0.0
    %1068 = vmatpush1.msra.mxu0 0.0
    %1069 = vmatprep.subr.mxu0 0.0
    %1070 = vmatpush1.msra.mxu0 0.0
    %1071 = vmatprep.subr.mxu0 0.0
    %1072 = vmatpush1.msra.mxu0 0.0
    %1073 = vmatprep.subr.mxu0 0.0
    %1074 = vmatpush1.msra.mxu0 0.0
    %1075 = vmatprep.subr.mxu0 0.0
    %1076 = vmatpush1.msra.mxu0 0.0
    %1077 = vmatprep.subr.mxu0 0.0
    %1078 = vmatpush1.msra.mxu0 0.0
    %1079 = vmatprep.subr.mxu0 0.0
    %1080 = vmatpush1.msra.mxu0 0.0
    %1081 = vmatprep.mubr.f32.mxu0 0.0
    %1082 = vmatmul.mubr.f32.gmra.mrb[0].mxu0 %v1015
    %v1083 = vpop.f32.mrb[0].mxu0
    %v1084 = vadd.f32 0.0, %v1083
    %v1085 = vpop.f32.mrb[0].mxu0
    %1086 = vdwg.mxu0
    %v1087 = vld [vmem:[%s4] sm:$0xff]
    %v1088 = vld [vmem:[%s4 + $0x8] sm:$0xff]
    %v1089 = vld [vmem:[%s4 + $0x10] sm:$0xff]
    %v1090 = vld [vmem:[%s4 + $0x18] sm:$0xff]
    %v1091 = vld [vmem:[%s5] sm:$0x1]
    %v1093 = vlaneseq
    %v1094 = vshrl.u32 %v1093, 7
    %v1095 = vsub.s32 0, %v1094
    %v1096 = vrot.slane %v1091, %v1095
    %v1099 = vsel %vm55, %v662, 0
    %v1102 = vsel %vm55, %v1084, 0
    %1104 = vmatprep.subr.mxu0 0.0
    %1105 = vmatpush1.msra.mxu0 %v1087
    %1106 = vmatprep.subr.mxu0 0.0
    %1107 = vmatpush1.msra.mxu0 %v1088
    %1108 = vmatprep.subr.mxu0 0.0
    %1109 = vmatpush1.msra.mxu0 %v1089
    %1110 = vmatprep.subr.mxu0 0.0
    %1111 = vmatpush1.msra.mxu0 %v1090
    %1112 = vmatprep.subr.mxu0 0.0
    %1113 = vmatpush1.msra.mxu0 0.0
    %1114 = vmatprep.subr.mxu0 0.0
    %1115 = vmatpush1.msra.mxu0 0.0
    %1116 = vmatprep.subr.mxu0 0.0
    %1117 = vmatpush1.msra.mxu0 0.0
    %1118 = vmatprep.subr.mxu0 0.0
    %1119 = vmatpush1.msra.mxu0 0.0
    %1120 = vmatprep.subr.mxu0 0.0
    %1121 = vmatpush1.msra.mxu0 0.0
    %1122 = vmatprep.subr.mxu0 0.0
    %1123 = vmatpush1.msra.mxu0 0.0
    %1124 = vmatprep.subr.mxu0 0.0
    %1125 = vmatpush1.msra.mxu0 0.0
    %1126 = vmatprep.subr.mxu0 0.0
    %1127 = vmatpush1.msra.mxu0 0.0
    %1128 = vmatprep.subr.mxu0 0.0
    %1129 = vmatpush1.msra.mxu0 0.0
    %1130 = vmatprep.subr.mxu0 0.0
    %1131 = vmatpush1.msra.mxu0 0.0
    %1132 = vmatprep.subr.mxu0 0.0
    %1133 = vmatpush1.msra.mxu0 0.0
    %1134 = vmatprep.subr.mxu0 0.0
    %1135 = vmatpush1.msra.mxu0 0.0
    %1136 = vmatprep.subr.mxu0 0.0
    %1137 = vmatpush1.msra.mxu0 0.0
    %1138 = vmatprep.subr.mxu0 0.0
    %1139 = vmatpush1.msra.mxu0 0.0
    %1140 = vmatprep.subr.mxu0 0.0
    %1141 = vmatpush1.msra.mxu0 0.0
    %1142 = vmatprep.subr.mxu0 0.0
    %1143 = vmatpush1.msra.mxu0 0.0
    %1144 = vmatprep.subr.mxu0 0.0
    %1145 = vmatpush1.msra.mxu0 0.0
    %1146 = vmatprep.subr.mxu0 0.0
    %1147 = vmatpush1.msra.mxu0 0.0
    %1148 = vmatprep.subr.mxu0 0.0
    %1149 = vmatpush1.msra.mxu0 0.0
    %1150 = vmatprep.subr.mxu0 0.0
    %1151 = vmatpush1.msra.mxu0 0.0
    %1152 = vmatprep.subr.mxu0 0.0
    %1153 = vmatpush1.msra.mxu0 0.0
    %1154 = vmatprep.subr.mxu0 0.0
    %1155 = vmatpush1.msra.mxu0 0.0
    %1156 = vmatprep.subr.mxu0 0.0
    %1157 = vmatpush1.msra.mxu0 0.0
    %1158 = vmatprep.subr.mxu0 0.0
    %1159 = vmatpush1.msra.mxu0 0.0
    %1160 = vmatprep.subr.mxu0 0.0
    %1161 = vmatpush1.msra.mxu0 0.0
    %1162 = vmatprep.subr.mxu0 0.0
    %1163 = vmatpush1.msra.mxu0 0.0
    %1164 = vmatprep.subr.mxu0 0.0
    %1165 = vmatpush1.msra.mxu0 0.0
    %1166 = vmatprep.subr.mxu0 0.0
    %1167 = vmatpush1.msra.mxu0 0.0
    %1168 = vmatprep.mubr.f32.mxu0 0.0
    %1169 = vmatmul.mubr.f32.gmra.mrb[0].mxu0 %v1099
    %v1170 = vpop.f32.mrb[0].mxu0
    %v1171 = vadd.f32 %v1096, %v1170
    %v1172 = vpop.f32.mrb[0].mxu0
    %1173 = vmatprep.mubr.f32.mxu0 0.0
    %1174 = vmatmul.mubr.f32.gmra.mrb[0].mxu0 %v1102
    %v1175 = vpop.f32.mrb[0].mxu0
    %v1176 = vadd.f32 %v1096, %v1175
    %v1177 = vpop.f32.mrb[0].mxu0
    %1178 = vdwg.mxu0
    %v1179 = vadd.f32 %v51, %v1171
    %v1180 = vadd.f32 %v52, %v1176
    %v1181 = vld [vmem:[%s6] sm:$0x1]
    %v1182 = vld [vmem:[%s7] sm:$0x1]
    %v1183 = vsel %vm55, %v1179, 0.0
    %1184 = vadd.xlane.f32.xlu0 %v1183
    %v1185 = vpop.xlane.xlu0 %1184
    %v1186 = vsel %vm55, %v1180, 0.0
    %1187 = vadd.xlane.f32.xlu0 %v1186
    %v1188 = vpop.xlane.xlu0 %1187
    %v1189 = vmul.f32 %v1185, %v62
    %v1190 = vmul.f32 %v1188, %v62
    %v1191 = vsub.f32 %v1179, %v1189
    %v1192 = vsub.f32 %v1180, %v1190
    %v1193 = vmul.f32 %v1191, %v1191
    %v1194 = vmul.f32 %v1192, %v1192
    %v1195 = vsel %vm55, %v1193, 0.0
    %1196 = vadd.xlane.f32.xlu0 %v1195
    %v1197 = vpop.xlane.xlu0 %1196
    %v1198 = vsel %vm55, %v1194, 0.0
    %1199 = vadd.xlane.f32.xlu0 %v1198
    %v1200 = vpop.xlane.xlu0 %1199
    %v1201 = vmul.f32 %v1197, %v62
    %v1202 = vmul.f32 %v1200, %v62
    %v1203 = vadd.f32 %v1201, 1e-05
    %v1204 = vadd.f32 %v1202, 1e-05
    %v1205 = vrsqrt.pop %v1203
    %v1206 = vrsqrt.pop %v1204
    %v1207 = vmul.f32 %v1191, %v1205
    %v1208 = vmul.f32 %v1192, %v1206
    %v1210 = vlaneseq
    %v1211 = vshrl.u32 %v1210, 7
    %v1212 = vsub.s32 0, %v1211
    %v1213 = vrot.slane %v1181, %v1212
    %v1215 = vmul.f32 %v1207, %v1213
    %v1216 = vmul.f32 %v1208, %v1213
    %v1218 = vlaneseq
    %v1219 = vshrl.u32 %v1218, 7
    %v1220 = vsub.s32 0, %v1219
    %v1221 = vrot.slane %v1182, %v1220
    %v1223 = vadd.f32 %v1215, %v1221
    %v1224 = vadd.f32 %v1216, %v1221
    %v1225 = vld [vmem:[%s8] sm:$0xff]
    %v1226 = vld [vmem:[%s8 + $0x8] sm:$0xff]
    %v1227 = vld [vmem:[%s8 + $0x10] sm:$0xff]
    %v1228 = vld [vmem:[%s8 + $0x18] sm:$0xff]
    %v1229 = vld [vmem:[%s9] sm:$0x1]
    %v1231 = vlaneseq
    %v1232 = vshrl.u32 %v1231, 7
    %v1233 = vsub.s32 0, %v1232
    %v1234 = vrot.slane %v1229, %v1233
    %v1237 = vsel %vm55, %v1223, 0
    %v1240 = vsel %vm55, %v1224, 0
    %1242 = vmatprep.subr.mxu0 0.0
    %1243 = vmatpush1.msra.mxu0 %v1225
    %1244 = vmatprep.subr.mxu0 0.0
    %1245 = vmatpush1.msra.mxu0 %v1226
    %1246 = vmatprep.subr.mxu0 0.0
    %1247 = vmatpush1.msra.mxu0 %v1227
    %1248 = vmatprep.subr.mxu0 0.0
    %1249 = vmatpush1.msra.mxu0 %v1228
    %1250 = vmatprep.subr.mxu0 0.0
    %1251 = vmatpush1.msra.mxu0 0.0
    %1252 = vmatprep.subr.mxu0 0.0
    %1253 = vmatpush1.msra.mxu0 0.0
    %1254 = vmatprep.subr.mxu0 0.0
    %1255 = vmatpush1.msra.mxu0 0.0
    %1256 = vmatprep.subr.mxu0 0.0
    %1257 = vmatpush1.msra.mxu0 0.0
    %1258 = vmatprep.subr.mxu0 0.0
    %1259 = vmatpush1.msra.mxu0 0.0
    %1260 = vmatprep.subr.mxu0 0.0
    %1261 = vmatpush1.msra.mxu0 0.0
    %1262 = vmatprep.subr.mxu0 0.0
    %1263 = vmatpush1.msra.mxu0 0.0
    %1264 = vmatprep.subr.mxu0 0.0
    %1265 = vmatpush1.msra.mxu0 0.0
    %1266 = vmatprep.subr.mxu0 0.0
    %1267 = vmatpush1.msra.mxu0 0.0
    %1268 = vmatprep.subr.mxu0 0.0
    %1269 = vmatpush1.msra.mxu0 0.0
    %1270 = vmatprep.subr.mxu0 0.0
    %1271 = vmatpush1.msra.mxu0 0.0
    %1272 = vmatprep.subr.mxu0 0.0
    %1273 = vmatpush1.msra.mxu0 0.0
    %1274 = vmatprep.subr.mxu0 0.0
    %1275 = vmatpush1.msra.mxu0 0.0
    %1276 = vmatprep.subr.mxu0 0.0
    %1277 = vmatpush1.msra.mxu0 0.0
    %1278 = vmatprep.subr.mxu0 0.0
    %1279 = vmatpush1.msra.mxu0 0.0
    %1280 = vmatprep.subr.mxu0 0.0
    %1281 = vmatpush1.msra.mxu0 0.0
    %1282 = vmatprep.subr.mxu0 0.0
    %1283 = vmatpush1.msra.mxu0 0.0
    %1284 = vmatprep.subr.mxu0 0.0
    %1285 = vmatpush1.msra.mxu0 0.0
    %1286 = vmatprep.subr.mxu0 0.0
    %1287 = vmatpush1.msra.mxu0 0.0
    %1288 = vmatprep.subr.mxu0 0.0
    %1289 = vmatpush1.msra.mxu0 0.0
    %1290 = vmatprep.subr.mxu0 0.0
    %1291 = vmatpush1.msra.mxu0 0.0
    %1292 = vmatprep.subr.mxu0 0.0
    %1293 = vmatpush1.msra.mxu0 0.0
    %1294 = vmatprep.subr.mxu0 0.0
    %1295 = vmatpush1.msra.mxu0 0.0
    %1296 = vmatprep.subr.mxu0 0.0
    %1297 = vmatpush1.msra.mxu0 0.0
    %1298 = vmatprep.subr.mxu0 0.0
    %1299 = vmatpush1.msra.mxu0 0.0
    %1300 = vmatprep.subr.mxu0 0.0
    %1301 = vmatpush1.msra.mxu0 0.0
    %1302 = vmatprep.subr.mxu0 0.0
    %1303 = vmatpush1.msra.mxu0 0.0
    %1304 = vmatprep.subr.mxu0 0.0
    %1305 = vmatpush1.msra.mxu0 0.0
    %1306 = vmatprep.mubr.f32.mxu0 0.0
    %1307 = vmatmul.mubr.f32.gmra.mrb[0].mxu0 %v1237
    %v1308 = vpop.f32.mrb[0].mxu0
    %v1309 = vadd.f32 %v1234, %v1308
    %v1310 = vpop.f32.mrb[0].mxu0
    %1311 = vmatprep.mubr.f32.mxu0 0.0
    %1312 = vmatmul.mubr.f32.gmra.mrb[0].mxu0 %v1240
    %v1313 = vpop.f32.mrb[0].mxu0
    %v1314 = vadd.f32 %v1234, %v1313
    %v1315 = vpop.f32.mrb[0].mxu0
    %1316 = vdwg.mxu0
    %v1317 = vmul.f32 %v1309, 0.5
    %v1318 = vmul.f32 %v1314, 0.5
    %v1319 = vmul.f32 %v1309, 0.70710677
    %v1320 = vmul.f32 %v1314, 0.70710677
    %vm1321 = vcmp.ge.f32.partialorder %v1319, 0.0
    %vm1322 = vcmp.ge.f32.partialorder %v1320, 0.0
    %v1323 = vsel %vm1321, 1.0, -1.0
    %v1324 = vsel %vm1322, 1.0, -1.0
    %v1325 = vand.u32 2147483647, %v1319
    %v1326 = vand.u32 2147483647, %v1320
    %v1327 = vmul.f32 %v1325, 0.3275911
    %v1328 = vmul.f32 %v1326, 0.3275911
    %v1329 = vadd.f32 %v1327, 1.0
    %v1330 = vadd.f32 %v1328, 1.0
    %v1331 = vrcp.pop %v1329
    %v1332 = vmul.f32 1.0, %v1331
    %v1333 = vrcp.pop %v1330
    %v1334 = vmul.f32 1.0, %v1333
    %v1335 = vmul.f32 %v1332, 1.0614054
    %v1336 = vmul.f32 %v1334, 1.0614054
    %v1337 = vadd.f32 %v1335, -1.4531521
    %v1338 = vadd.f32 %v1336, -1.4531521
    %v1339 = vmul.f32 %v1337, %v1332
    %v1340 = vmul.f32 %v1338, %v1334
    %v1341 = vadd.f32 %v1339, 1.4214138
    %v1342 = vadd.f32 %v1340, 1.4214138
    %v1343 = vmul.f32 %v1341, %v1332
    %v1344 = vmul.f32 %v1342, %v1334
    %v1345 = vadd.f32 %v1343, -0.28449672
    %v1346 = vadd.f32 %v1344, -0.28449672
    %v1347 = vmul.f32 %v1345, %v1332
    %v1348 = vmul.f32 %v1346, %v1334
    %v1349 = vadd.f32 %v1347, 0.2548296
    %v1350 = vadd.f32 %v1348, 0.2548296
    %v1351 = vmul.f32 %v1349, %v1332
    %v1352 = vmul.f32 %v1350, %v1334
    %v1353 = vsub.f32 0.0, %v1325
    %v1354 = vsub.f32 0.0, %v1326
    %v1355 = vmul.f32 %v1353, %v1325
    %v1356 = vmul.f32 %v1354, %v1326
    %v1357 = vmul.f32 %v1355, 1.442695
    %v1358 = vpow.pop %v1357
    %v1359 = vmul.f32 %v1356, 1.442695
    %v1360 = vpow.pop %v1359
    %v1361 = vmul.f32 %v1351, %v1358
    %v1362 = vmul.f32 %v1352, %v1360
    %v1363 = vsub.f32 1.0, %v1361
    %v1364 = vsub.f32 1.0, %v1362
    %v1365 = vmul.f32 %v1323, %v1363
    %v1366 = vmul.f32 %v1324, %v1364
    %v1367 = vadd.f32 %v1365, 1.0
    %v1368 = vadd.f32 %v1366, 1.0
    %v1369 = vmul.f32 %v1317, %v1367
    %v1370 = vmul.f32 %v1318, %v1368
    %v1371 = vld [vmem:[%s10] sm:$0xff]
    %v1372 = vld [vmem:[%s10 + $0x8] sm:$0xff]
    %v1373 = vld [vmem:[%s10 + $0x10] sm:$0xff]
    %v1374 = vld [vmem:[%s10 + $0x18] sm:$0xff]
    %v1375 = vld [vmem:[%s10 + $0x20] sm:$0xff]
    %v1376 = vld [vmem:[%s10 + $0x28] sm:$0xff]
    %v1377 = vld [vmem:[%s10 + $0x30] sm:$0xff]
    %v1378 = vld [vmem:[%s10 + $0x38] sm:$0xff]
    %v1379 = vld [vmem:[%s10 + $0x40] sm:$0xff]
    %v1380 = vld [vmem:[%s10 + $0x48] sm:$0xff]
    %v1381 = vld [vmem:[%s10 + $0x50] sm:$0xff]
    %v1382 = vld [vmem:[%s10 + $0x58] sm:$0xff]
    %v1383 = vld [vmem:[%s10 + $0x60] sm:$0xff]
    %v1384 = vld [vmem:[%s10 + $0x68] sm:$0xff]
    %v1385 = vld [vmem:[%s10 + $0x70] sm:$0xff]
    %v1386 = vld [vmem:[%s10 + $0x78] sm:$0xff]
    %v1387 = vld [vmem:[%s11] sm:$0x1]
    %v1389 = vlaneseq
    %v1390 = vshrl.u32 %v1389, 7
    %v1391 = vsub.s32 0, %v1390
    %v1392 = vrot.slane %v1387, %v1391
    %1394 = vmatprep.subr.mxu0 0.0
    %1395 = vmatpush1.msra.mxu0 %v1371
    %1396 = vmatprep.subr.mxu0 0.0
    %1397 = vmatpush1.msra.mxu0 %v1372
    %1398 = vmatprep.subr.mxu0 0.0
    %1399 = vmatpush1.msra.mxu0 %v1373
    %1400 = vmatprep.subr.mxu0 0.0
    %1401 = vmatpush1.msra.mxu0 %v1374
    %1402 = vmatprep.subr.mxu0 0.0
    %1403 = vmatpush1.msra.mxu0 %v1375
    %1404 = vmatprep.subr.mxu0 0.0
    %1405 = vmatpush1.msra.mxu0 %v1376
    %1406 = vmatprep.subr.mxu0 0.0
    %1407 = vmatpush1.msra.mxu0 %v1377
    %1408 = vmatprep.subr.mxu0 0.0
    %1409 = vmatpush1.msra.mxu0 %v1378
    %1410 = vmatprep.subr.mxu0 0.0
    %1411 = vmatpush1.msra.mxu0 %v1379
    %1412 = vmatprep.subr.mxu0 0.0
    %1413 = vmatpush1.msra.mxu0 %v1380
    %1414 = vmatprep.subr.mxu0 0.0
    %1415 = vmatpush1.msra.mxu0 %v1381
    %1416 = vmatprep.subr.mxu0 0.0
    %1417 = vmatpush1.msra.mxu0 %v1382
    %1418 = vmatprep.subr.mxu0 0.0
    %1419 = vmatpush1.msra.mxu0 %v1383
    %1420 = vmatprep.subr.mxu0 0.0
    %1421 = vmatpush1.msra.mxu0 %v1384
    %1422 = vmatprep.subr.mxu0 0.0
    %1423 = vmatpush1.msra.mxu0 %v1385
    %1424 = vmatprep.subr.mxu0 0.0
    %1425 = vmatpush1.msra.mxu0 %v1386
    %1426 = vmatprep.subr.mxu0 0.0
    %1427 = vmatpush1.msra.mxu0 0.0
    %1428 = vmatprep.subr.mxu0 0.0
    %1429 = vmatpush1.msra.mxu0 0.0
    %1430 = vmatprep.subr.mxu0 0.0
    %1431 = vmatpush1.msra.mxu0 0.0
    %1432 = vmatprep.subr.mxu0 0.0
    %1433 = vmatpush1.msra.mxu0 0.0
    %1434 = vmatprep.subr.mxu0 0.0
    %1435 = vmatpush1.msra.mxu0 0.0
    %1436 = vmatprep.subr.mxu0 0.0
    %1437 = vmatpush1.msra.mxu0 0.0
    %1438 = vmatprep.subr.mxu0 0.0
    %1439 = vmatpush1.msra.mxu0 0.0
    %1440 = vmatprep.subr.mxu0 0.0
    %1441 = vmatpush1.msra.mxu0 0.0
    %1442 = vmatprep.subr.mxu0 0.0
    %1443 = vmatpush1.msra.mxu0 0.0
    %1444 = vmatprep.subr.mxu0 0.0
    %1445 = vmatpush1.msra.mxu0 0.0
    %1446 = vmatprep.subr.mxu0 0.0
    %1447 = vmatpush1.msra.mxu0 0.0
    %1448 = vmatprep.subr.mxu0 0.0
    %1449 = vmatpush1.msra.mxu0 0.0
    %1450 = vmatprep.subr.mxu0 0.0
    %1451 = vmatpush1.msra.mxu0 0.0
    %1452 = vmatprep.subr.mxu0 0.0
    %1453 = vmatpush1.msra.mxu0 0.0
    %1454 = vmatprep.subr.mxu0 0.0
    %1455 = vmatpush1.msra.mxu0 0.0
    %1456 = vmatprep.subr.mxu0 0.0
    %1457 = vmatpush1.msra.mxu0 0.0
    %1458 = vmatprep.mubr.f32.mxu0 0.0
    %1459 = vmatmul.mubr.f32.gmra.mrb[0].mxu0 %v1369
    %v1460 = vpop.f32.mrb[0].mxu0
    %v1461 = vadd.f32 %v1392, %v1460
    %v1462 = vpop.f32.mrb[0].mxu0
    %1463 = vmatprep.mubr.f32.mxu0 0.0
    %1464 = vmatmul.mubr.f32.gmra.mrb[0].mxu0 %v1370
    %v1465 = vpop.f32.mrb[0].mxu0
    %v1466 = vadd.f32 %v1392, %v1465
    %v1467 = vpop.f32.mrb[0].mxu0
    %1468 = vdwg.mxu0
    %v1469 = vadd.f32 %v1179, %v1461
    %v1470 = vadd.f32 %v1180, %v1466
    %1471 = vst.msk [vmem:[#allocation2] sm:$0xff] %vm55, %v1469
    %1472 = vst.msk [vmem:[#allocation2 + $0x8] sm:$0xff] %vm55, %v1470
    // Predicated region
    $region62: #{block_pallas.1} parent=1 // pred_check
      _
    $region63: #{block_pallas.1} parent=1 // pred_check_branch
      %1474 = sbr.rel (0) target = $region65
    $region64: #{block_pallas.1} parent=1 // pred_region
      %s1476 = ssub.s32 256, 256
      %1477 = vsyncadd [#allocation3], %s1476
      %s1478 = sshll.u32 [#allocation2], 4
      %s1479 = int_to_ptr.vmem [resolvable:$true] %s1478
      %1484 = dma.vmem_to_hbm [thread:$0]  %s1479, 256, %s15, [#allocation3], 128, 128, 8
    $region65: #{block_pallas.1} parent=1 // pred_fallthru
      _
    // Predicated region
    $region66: #{block_pallas.1} parent=1 // pred_check
      _
    $region67: #{block_pallas.1} parent=1 // pred_check_branch
      %1486 = sbr.rel (0) target = $region69
    $region68: #{block_pallas.1} parent=1 // pred_region
      %1487 = dma.done [#allocation3], 256
    $region69: #{block_pallas.1} parent=1 // pred_fallthru
      _
    %1488 = vsyncpa [#allocation3], 1

</llo_original>
